<compile_context>
chip_gen: v7x
topology: tpu7x:2x2x1
jax: 0.10.0
libtpu: 0.0.40
codegen_flags: <defaults>
</compile_context>

<pallas_src>
import functools
import math

import jax
import jax.numpy as jnp
from jax.experimental import pallas as pl
from jax.experimental.pallas import tpu as pltpu

# ---- module hyper-parameters ----
DIM = 32
DIM_FF = 64
NHEAD = 4
HEAD_DIM = DIM // NHEAD
LN_EPS = 1e-5  # nn.LayerNorm default


def _tensorcores_per_chip():
    """v7x has 2 TensorCores per chip -> shard the batch across them.
    v5e / v6e have 1 TC -> a grid would just be a serial loop, so stay gridless."""
    try:
        kind = jax.devices()[0].device_kind.lower()
    except Exception:
        return 1
    return 2 if ("v7" in kind or "7x" in kind) else 1


_TC_PER_CHIP = _tensorcores_per_chip()


def _layer_norm(x, gamma, beta):
    mu = jnp.mean(x, axis=-1, keepdims=True)
    var = jnp.mean((x - mu) ** 2, axis=-1, keepdims=True)
    return (x - mu) * jax.lax.rsqrt(var + LN_EPS) * gamma + beta


def _self_attention_kernel(Bb, S, L,
                           q_ref, k_ref, v_ref,
                           wattn_ref, w1_ref, w2_ref, vec_ref,
                           out_ref):
    # Per-block row slabs (flattened batch*rows on the sublane axis).
    q = q_ref[...]            # (Bb*S, D)
    k = k_ref[...]            # (Bb*L, D)
    v = v_ref[...]            # (Bb*L, D)

    # Packed attention weights: rows [0:D]=Wq (pre-scaled), [D:2D]=Wk, [2D:3D]=Wv, [3D:4D]=Wo.
    wq = wattn_ref[0 * DIM:1 * DIM, :]
    wk = wattn_ref[1 * DIM:2 * DIM, :]
    wv = wattn_ref[2 * DIM:3 * DIM, :]
    wo = wattn_ref[3 * DIM:4 * DIM, :]

    # Packed bias / LayerNorm vectors (one (10, DIM_FF) slab). bq is pre-scaled.
    bq = vec_ref[0:1, :DIM]
    bk = vec_ref[1:2, :DIM]
    bv = vec_ref[2:3, :DIM]
    bo = vec_ref[3:4, :DIM]
    g1 = vec_ref[4:5, :DIM]
    be1 = vec_ref[5:6, :DIM]
    b1 = vec_ref[6:7, :]      # (1, DIM_FF)
    b2 = vec_ref[7:8, :DIM]
    g2 = vec_ref[8:9, :DIM]
    be2 = vec_ref[9:10, :DIM]

    # --- Q / K / V projections on the flattened (rows, D) slabs (scale already folded in) ---
    qp = jnp.dot(q, wq, preferred_element_type=jnp.float32) + bq
    kp = jnp.dot(k, wk, preferred_element_type=jnp.float32) + bk
    vp = jnp.dot(v, wv, preferred_element_type=jnp.float32) + bv

    # One cheap leading-dim reshape per projection; per head we only slice the lane axis.
    qp3 = qp.reshape(Bb, S, DIM)
    kp3 = kp.reshape(Bb, L, DIM)
    vp3 = vp.reshape(Bb, L, DIM)

    ctx_heads = []
    for h in range(NHEAD):
        lo = h * HEAD_DIM
        qh = qp3[:, :, lo:lo + HEAD_DIM]         # (Bb, S, hd) lane slice
        kh = kp3[:, :, lo:lo + HEAD_DIM]         # (Bb, L, hd)
        vh = vp3[:, :, lo:lo + HEAD_DIM]         # (Bb, L, hd)
        # contract over head_dim directly (no kh.T materialization)
        s = jnp.einsum('bsh,blh->bsl', qh, kh, preferred_element_type=jnp.float32)
        s = s - jnp.max(s, axis=-1, keepdims=True)
        e = jnp.exp(s)
        denom = jnp.sum(e, axis=-1, keepdims=True)
        # EUP approximate reciprocal + one Newton step -> ~f32 accuracy, divide off the VALU.
        r = pl.reciprocal(denom, approx=True)
        r = r * (2.0 - denom * r)
        p = e * r                                # softmax over L
        ctx_heads.append(jnp.einsum('bsl,blh->bsh', p, vh,
                                    preferred_element_type=jnp.float32))

    # Lane-concat heads, then ONE K=32 output-projection matmul with the full Wo.
    ctx = jnp.concatenate(ctx_heads, axis=-1).reshape(Bb * S, DIM)
    msa = jnp.dot(ctx, wo, preferred_element_type=jnp.float32) + bo

    # --- residual + LayerNorm1 ---
    x = _layer_norm(q + msa, g1, be1)

    # --- FFN: Linear -> ReLU -> (Dropout: identity) -> Linear, residual ---
    h1 = jnp.maximum(jnp.dot(x, w1_ref[...], preferred_element_type=jnp.float32) + b1, 0.0)
    ffn = jnp.dot(h1, w2_ref[...], preferred_element_type=jnp.float32) + b2

    # --- residual + LayerNorm2, single contiguous (rows, D) store slab ---
    out_ref[...] = _layer_norm(x + ffn, g2, be2)


def pack_params(params):
    """ONE-TIME parameter packing (hoisted out of the per-call hot path).

    Folds 1/sqrt(head_dim) into Wq/bq and packs the 16 tiny tensors into 3 weight slabs
    + 1 vector slab, so each forward call does zero wrapper-side XLA ops and only 4
    parameter DMAs."""
    (wq, bq, wk, bk, wv, bv, wo, bo,
     g1, be1, w1, b1, w2, b2, g2, be2) = params
    scale = 1.0 / math.sqrt(HEAD_DIM)
    w_attn = jnp.concatenate([wq * scale, wk, wv, wo], axis=0)          # (4*D, D)

    def row(t):
        t = t.reshape(1, -1)
        return jnp.pad(t, ((0, 0), (0, DIM_FF - t.shape[1])))

    vecs = jnp.concatenate(
        [row(t) for t in (bq * scale, bk, bv, bo, g1, be1, b1, b2, g2, be2)],
        axis=0)                                                         # (10, DIM_FF)
    return (w_attn, w1, w2, vecs)


def self_attention_forward(q, k, v, packed_params):
    """Forward pass. One pallas_call; everything lives in VMEM (KiB-scale working set).

    On v7x the batch is split across the two TensorCores with a parallel grid; on
    v5e/v6e the kernel stays gridless (a grid would only add serial per-step overhead)."""
    w_attn, w1, w2, vecs = packed_params
    B, S, D = q.shape
    L = k.shape[1]
    assert D == DIM

    # Flatten batch*rows onto the sublane axis (free XLA reshape outside the kernel).
    q2 = q.reshape(B * S, D)
    k2 = k.reshape(B * L, D)
    v2 = v.reshape(B * L, D)

    num_blocks = 2 if (_TC_PER_CHIP >= 2 and B % 2 == 0) else 1
    Bb = B // num_blocks
    kernel = functools.partial(_self_attention_kernel, Bb, S, L)
    vmem = pl.BlockSpec(memory_space=pltpu.MemorySpace.VMEM)

    if num_blocks == 1:
        # Gridless single invocation (v5e / v6e, or odd batch).
        out = pl.pallas_call(
            kernel,
            out_shape=jax.ShapeDtypeStruct((B * S, D), jnp.float32),
            in_specs=[vmem] * 7,
            out_specs=vmem,
        )(q2, k2, v2, w_attn, w1, w2, vecs)
    else:
        # v7x: one batch-half per TensorCore.
        out = pl.pallas_call(
            kernel,
            out_shape=jax.ShapeDtypeStruct((B * S, D), jnp.float32),
            grid=(num_blocks,),
            in_specs=[
                pl.BlockSpec((Bb * S, D), lambda i: (i, 0)),
                pl.BlockSpec((Bb * L, D), lambda i: (i, 0)),
                pl.BlockSpec((Bb * L, D), lambda i: (i, 0)),
                vmem, vmem, vmem, vmem,           # whole weight slabs every step
            ],
            out_specs=pl.BlockSpec((Bb * S, D), lambda i: (i, 0)),
            compiler_params=pltpu.CompilerParams(
                dimension_semantics=("parallel",)),
        )(q2, k2, v2, w_attn, w1, w2, vecs)
    return out.reshape(B, S, D)


def make_params(key):
    """Deterministic parameter init matching the PyTorch module's shapes."""
    ks = jax.random.split(key, 12)

    def w(kk, shape):
        return jax.random.normal(kk, shape, jnp.float32) * 0.05

    wq = w(ks[0], (DIM, DIM));     bq = w(ks[1], (1, DIM))
    wk = w(ks[2], (DIM, DIM));     bk = w(ks[3], (1, DIM))
    wv = w(ks[4], (DIM, DIM));     bv = w(ks[5], (1, DIM))
    wo = w(ks[6], (DIM, DIM));     bo = w(ks[7], (1, DIM))
    g1 = jnp.ones((1, DIM), jnp.float32);  be1 = jnp.zeros((1, DIM), jnp.float32)
    w1 = w(ks[8], (DIM, DIM_FF));  b1 = w(ks[9], (1, DIM_FF))
    w2 = w(ks[10], (DIM_FF, DIM)); b2 = w(ks[11], (1, DIM))
    g2 = jnp.ones((1, DIM), jnp.float32);  be2 = jnp.zeros((1, DIM), jnp.float32)
    return (wq, bq, wk, bk, wv, bv, wo, bo, g1, be1, w1, b1, w2, b2, g2, be2)


def reference_forward(q, k, v, params):
    """Pure-JAX reference mirroring the PyTorch forward in eval mode."""
    (wq, bq, wk, bk, wv, bv, wo, bo,
     g1, be1, w1, b1, w2, b2, g2, be2) = params
    B, S, D = q.shape
    L = k.shape[1]

    def split_heads(x, n):
        return x.reshape(B, n, NHEAD, HEAD_DIM).transpose(0, 2, 1, 3)

    qp = split_heads(q @ wq + bq, S)
    kp = split_heads(k @ wk + bk, L)
    vp = split_heads(v @ wv + bv, L)
    scores = jnp.einsum('bhsd,bhld->bhsl', qp, kp) / math.sqrt(HEAD_DIM)
    p = jax.nn.softmax(scores, axis=-1)
    attn = jnp.einsum('bhsl,bhld->bhsd', p, vp).transpose(0, 2, 1, 3).reshape(B, S, D)
    msa = attn @ wo + bo
    x = _layer_norm(q + msa, g1, be1)
    x = x + (jnp.maximum(x @ w1 + b1, 0.0) @ w2 + b2)
    return _layer_norm(x, g2, be2)


if __name__ == "__main__":
    B, S, L = 2, 8, 8
    key = jax.random.PRNGKey(0)
    kq, kk, kv, kp = jax.random.split(key, 4)

    q = jax.random.normal(kq, (B, S, DIM), jnp.float32)
    k = jax.random.normal(kk, (B, L, DIM), jnp.float32)
    v = jax.random.normal(kv, (B, L, DIM), jnp.float32)

    params = make_params(kp)
    packed = pack_params(params)   # one-time packing, NOT in the per-call hot path

    out = jax.block_until_ready(self_attention_forward(q, k, v, packed))
    ref = reference_forward(q, k, v, params)

    assert out.shape == (B, S, DIM)
    # approx-reciprocal + Newton refinement keeps ~f32 accuracy
    assert jnp.allclose(out, ref, atol=5e-4, rtol=5e-4), "mismatch vs JAX reference"
    print("KERNEL_OK")
</pallas_src>

<mosaic_0001>
module attributes {stable_mosaic.version = 11 : i64} {
  func.func @_self_attention_kernel(%arg0: memref<16x32xf32, #tpu.memory_space<vmem>>, %arg1: memref<16x32xf32, #tpu.memory_space<vmem>>, %arg2: memref<16x32xf32, #tpu.memory_space<vmem>>, %arg3: memref<128x32xf32, #tpu.memory_space<vmem>>, %arg4: memref<32x64xf32, #tpu.memory_space<vmem>>, %arg5: memref<64x32xf32, #tpu.memory_space<vmem>>, %arg6: memref<10x64xf32, #tpu.memory_space<vmem>>, %arg7: memref<16x32xf32, #tpu.memory_space<vmem>>) attributes {dimension_semantics = [], scalar_prefetch = 0 : i64, scratch_operands = 0 : i64, tpu.core_type = #tpu.core_type<tc>} {
    %c0 = arith.constant 0 : index
    %c0_0 = arith.constant 0 : index
    %0 = vector.load %arg0[%c0, %c0_0] : memref<16x32xf32, #tpu.memory_space<vmem>>, vector<16x32xf32>
    %c0_1 = arith.constant 0 : index
    %c0_2 = arith.constant 0 : index
    %1 = vector.load %arg1[%c0_1, %c0_2] : memref<16x32xf32, #tpu.memory_space<vmem>>, vector<16x32xf32>
    %c0_3 = arith.constant 0 : index
    %c0_4 = arith.constant 0 : index
    %2 = vector.load %arg2[%c0_3, %c0_4] : memref<16x32xf32, #tpu.memory_space<vmem>>, vector<16x32xf32>
    %c0_5 = arith.constant 0 : index
    %c0_6 = arith.constant 0 : index
    %3 = vector.load %arg3[%c0_5, %c0_6] : memref<128x32xf32, #tpu.memory_space<vmem>>, vector<32x32xf32>
    %c32 = arith.constant 32 : index
    %c0_7 = arith.constant 0 : index
    %4 = vector.load %arg3[%c32, %c0_7] : memref<128x32xf32, #tpu.memory_space<vmem>>, vector<32x32xf32>
    %c64 = arith.constant 64 : index
    %c0_8 = arith.constant 0 : index
    %5 = vector.load %arg3[%c64, %c0_8] : memref<128x32xf32, #tpu.memory_space<vmem>>, vector<32x32xf32>
    %c96 = arith.constant 96 : index
    %c0_9 = arith.constant 0 : index
    %6 = vector.load %arg3[%c96, %c0_9] : memref<128x32xf32, #tpu.memory_space<vmem>>, vector<32x32xf32>
    %c0_10 = arith.constant 0 : index
    %c0_11 = arith.constant 0 : index
    %7 = vector.load %arg6[%c0_10, %c0_11] : memref<10x64xf32, #tpu.memory_space<vmem>>, vector<1x32xf32>
    %c1 = arith.constant 1 : index
    %c0_12 = arith.constant 0 : index
    %8 = vector.load %arg6[%c1, %c0_12] : memref<10x64xf32, #tpu.memory_space<vmem>>, vector<1x32xf32>
    %c2 = arith.constant 2 : index
    %c0_13 = arith.constant 0 : index
    %9 = vector.load %arg6[%c2, %c0_13] : memref<10x64xf32, #tpu.memory_space<vmem>>, vector<1x32xf32>
    %c3 = arith.constant 3 : index
    %c0_14 = arith.constant 0 : index
    %10 = vector.load %arg6[%c3, %c0_14] : memref<10x64xf32, #tpu.memory_space<vmem>>, vector<1x32xf32>
    %c4 = arith.constant 4 : index
    %c0_15 = arith.constant 0 : index
    %11 = vector.load %arg6[%c4, %c0_15] : memref<10x64xf32, #tpu.memory_space<vmem>>, vector<1x32xf32>
    %c5 = arith.constant 5 : index
    %c0_16 = arith.constant 0 : index
    %12 = vector.load %arg6[%c5, %c0_16] : memref<10x64xf32, #tpu.memory_space<vmem>>, vector<1x32xf32>
    %c6 = arith.constant 6 : index
    %c0_17 = arith.constant 0 : index
    %13 = vector.load %arg6[%c6, %c0_17] : memref<10x64xf32, #tpu.memory_space<vmem>>, vector<1x64xf32>
    %c7 = arith.constant 7 : index
    %c0_18 = arith.constant 0 : index
    %14 = vector.load %arg6[%c7, %c0_18] : memref<10x64xf32, #tpu.memory_space<vmem>>, vector<1x32xf32>
    %c8 = arith.constant 8 : index
    %c0_19 = arith.constant 0 : index
    %15 = vector.load %arg6[%c8, %c0_19] : memref<10x64xf32, #tpu.memory_space<vmem>>, vector<1x32xf32>
    %c9 = arith.constant 9 : index
    %c0_20 = arith.constant 0 : index
    %16 = vector.load %arg6[%c9, %c0_20] : memref<10x64xf32, #tpu.memory_space<vmem>>, vector<1x32xf32>
    %cst = arith.constant dense<0.000000e+00> : vector<16x32xf32>
    %17 = tpu.matmul %0, %3, %cst {dimension_numbers = #tpu.dot_dimension_numbers<[1], [0], [0], [1], [0, 0, 1, 1], [], []>} : vector<16x32xf32>, vector<32x32xf32>, vector<16x32xf32> -> vector<16x32xf32>
    %18 = vector.broadcast %7 : vector<1x32xf32> to vector<16x32xf32>
    %19 = arith.addf %17, %18 : vector<16x32xf32>
    %cst_21 = arith.constant dense<0.000000e+00> : vector<16x32xf32>
    %20 = tpu.matmul %1, %4, %cst_21 {dimension_numbers = #tpu.dot_dimension_numbers<[1], [0], [0], [1], [0, 0, 1, 1], [], []>} : vector<16x32xf32>, vector<32x32xf32>, vector<16x32xf32> -> vector<16x32xf32>
    %21 = vector.broadcast %8 : vector<1x32xf32> to vector<16x32xf32>
    %22 = arith.addf %20, %21 : vector<16x32xf32>
    %cst_22 = arith.constant dense<0.000000e+00> : vector<16x32xf32>
    %23 = tpu.matmul %2, %5, %cst_22 {dimension_numbers = #tpu.dot_dimension_numbers<[1], [0], [0], [1], [0, 0, 1, 1], [], []>} : vector<16x32xf32>, vector<32x32xf32>, vector<16x32xf32> -> vector<16x32xf32>
    %24 = vector.broadcast %9 : vector<1x32xf32> to vector<16x32xf32>
    %25 = arith.addf %23, %24 : vector<16x32xf32>
    %26 = vector.shape_cast %19 : vector<16x32xf32> to vector<2x8x32xf32>
    %27 = vector.shape_cast %22 : vector<16x32xf32> to vector<2x8x32xf32>
    %28 = vector.shape_cast %25 : vector<16x32xf32> to vector<2x8x32xf32>
    %29 = vector.extract_strided_slice %26 {offsets = [0, 0, 0], sizes = [2, 8, 8], strides = [1, 1, 1]} : vector<2x8x32xf32> to vector<2x8x8xf32>
    %30 = vector.extract_strided_slice %27 {offsets = [0, 0, 0], sizes = [2, 8, 8], strides = [1, 1, 1]} : vector<2x8x32xf32> to vector<2x8x8xf32>
    %31 = vector.extract_strided_slice %28 {offsets = [0, 0, 0], sizes = [2, 8, 8], strides = [1, 1, 1]} : vector<2x8x32xf32> to vector<2x8x8xf32>
    "tpu.trace_start"() <{level = 10 : i32, message = "bsh,blh->bsl"}> : () -> ()
    %cst_23 = arith.constant dense<0.000000e+00> : vector<2x8x8xf32>
    %32 = tpu.matmul %29, %30, %cst_23 {dimension_numbers = #tpu.dot_dimension_numbers<[2], [2], [1], [1], [0, 0, 0, 1, 1, 1], [0], [0]>} : vector<2x8x8xf32>, vector<2x8x8xf32>, vector<2x8x8xf32> -> vector<2x8x8xf32>
    "tpu.trace_stop"() : () -> ()
    %cst_24 = arith.constant dense<0xFF800000> : vector<2x8xf32>
    %33 = vector.multi_reduction <maximumf>, %32, %cst_24 [2] : vector<2x8x8xf32> to vector<2x8xf32>
    %34 = vector.shape_cast %33 : vector<2x8xf32> to vector<2x8x1xf32>
    %35 = vector.broadcast %34 : vector<2x8x1xf32> to vector<2x8x8xf32>
    %36 = arith.subf %32, %35 : vector<2x8x8xf32>
    %37 = math.exp %36 : vector<2x8x8xf32>
    %cst_25 = arith.constant dense<0.000000e+00> : vector<2x8xf32>
    %38 = vector.multi_reduction <add>, %37, %cst_25 [2] : vector<2x8x8xf32> to vector<2x8xf32>
    %39 = vector.shape_cast %38 : vector<2x8xf32> to vector<2x8x1xf32>
    %40 = tpu.reciprocal %39 {approx = true} : vector<2x8x1xf32> -> vector<2x8x1xf32>
    %41 = arith.mulf %39, %40 : vector<2x8x1xf32>
    %cst_26 = arith.constant 2.000000e+00 : f32
    %42 = vector.broadcast %cst_26 : f32 to vector<2x8x1xf32>
    %43 = arith.subf %42, %41 : vector<2x8x1xf32>
    %44 = arith.mulf %40, %43 : vector<2x8x1xf32>
    %45 = vector.broadcast %44 : vector<2x8x1xf32> to vector<2x8x8xf32>
    %46 = arith.mulf %37, %45 : vector<2x8x8xf32>
    "tpu.trace_start"() <{level = 10 : i32, message = "bsl,blh->bsh"}> : () -> ()
    %cst_27 = arith.constant dense<0.000000e+00> : vector<2x8x8xf32>
    %47 = tpu.matmul %46, %31, %cst_27 {dimension_numbers = #tpu.dot_dimension_numbers<[2], [1], [1], [2], [0, 0, 0, 1, 1, 2], [0], [0]>} : vector<2x8x8xf32>, vector<2x8x8xf32>, vector<2x8x8xf32> -> vector<2x8x8xf32>
    "tpu.trace_stop"() : () -> ()
    %48 = vector.extract_strided_slice %26 {offsets = [0, 0, 8], sizes = [2, 8, 8], strides = [1, 1, 1]} : vector<2x8x32xf32> to vector<2x8x8xf32>
    %49 = vector.extract_strided_slice %27 {offsets = [0, 0, 8], sizes = [2, 8, 8], strides = [1, 1, 1]} : vector<2x8x32xf32> to vector<2x8x8xf32>
    %50 = vector.extract_strided_slice %28 {offsets = [0, 0, 8], sizes = [2, 8, 8], strides = [1, 1, 1]} : vector<2x8x32xf32> to vector<2x8x8xf32>
    "tpu.trace_start"() <{level = 10 : i32, message = "bsh,blh->bsl"}> : () -> ()
    %cst_28 = arith.constant dense<0.000000e+00> : vector<2x8x8xf32>
    %51 = tpu.matmul %48, %49, %cst_28 {dimension_numbers = #tpu.dot_dimension_numbers<[2], [2], [1], [1], [0, 0, 0, 1, 1, 1], [0], [0]>} : vector<2x8x8xf32>, vector<2x8x8xf32>, vector<2x8x8xf32> -> vector<2x8x8xf32>
    "tpu.trace_stop"() : () -> ()
    %cst_29 = arith.constant dense<0xFF800000> : vector<2x8xf32>
    %52 = vector.multi_reduction <maximumf>, %51, %cst_29 [2] : vector<2x8x8xf32> to vector<2x8xf32>
    %53 = vector.shape_cast %52 : vector<2x8xf32> to vector<2x8x1xf32>
    %54 = vector.broadcast %53 : vector<2x8x1xf32> to vector<2x8x8xf32>
    %55 = arith.subf %51, %54 : vector<2x8x8xf32>
    %56 = math.exp %55 : vector<2x8x8xf32>
    %cst_30 = arith.constant dense<0.000000e+00> : vector<2x8xf32>
    %57 = vector.multi_reduction <add>, %56, %cst_30 [2] : vector<2x8x8xf32> to vector<2x8xf32>
    %58 = vector.shape_cast %57 : vector<2x8xf32> to vector<2x8x1xf32>
    %59 = tpu.reciprocal %58 {approx = true} : vector<2x8x1xf32> -> vector<2x8x1xf32>
    %60 = arith.mulf %58, %59 : vector<2x8x1xf32>
    %cst_31 = arith.constant 2.000000e+00 : f32
    %61 = vector.broadcast %cst_31 : f32 to vector<2x8x1xf32>
    %62 = arith.subf %61, %60 : vector<2x8x1xf32>
    %63 = arith.mulf %59, %62 : vector<2x8x1xf32>
    %64 = vector.broadcast %63 : vector<2x8x1xf32> to vector<2x8x8xf32>
    %65 = arith.mulf %56, %64 : vector<2x8x8xf32>
    "tpu.trace_start"() <{level = 10 : i32, message = "bsl,blh->bsh"}> : () -> ()
    %cst_32 = arith.constant dense<0.000000e+00> : vector<2x8x8xf32>
    %66 = tpu.matmul %65, %50, %cst_32 {dimension_numbers = #tpu.dot_dimension_numbers<[2], [1], [1], [2], [0, 0, 0, 1, 1, 2], [0], [0]>} : vector<2x8x8xf32>, vector<2x8x8xf32>, vector<2x8x8xf32> -> vector<2x8x8xf32>
    "tpu.trace_stop"() : () -> ()
    %67 = vector.extract_strided_slice %26 {offsets = [0, 0, 16], sizes = [2, 8, 8], strides = [1, 1, 1]} : vector<2x8x32xf32> to vector<2x8x8xf32>
    %68 = vector.extract_strided_slice %27 {offsets = [0, 0, 16], sizes = [2, 8, 8], strides = [1, 1, 1]} : vector<2x8x32xf32> to vector<2x8x8xf32>
    %69 = vector.extract_strided_slice %28 {offsets = [0, 0, 16], sizes = [2, 8, 8], strides = [1, 1, 1]} : vector<2x8x32xf32> to vector<2x8x8xf32>
    "tpu.trace_start"() <{level = 10 : i32, message = "bsh,blh->bsl"}> : () -> ()
    %cst_33 = arith.constant dense<0.000000e+00> : vector<2x8x8xf32>
    %70 = tpu.matmul %67, %68, %cst_33 {dimension_numbers = #tpu.dot_dimension_numbers<[2], [2], [1], [1], [0, 0, 0, 1, 1, 1], [0], [0]>} : vector<2x8x8xf32>, vector<2x8x8xf32>, vector<2x8x8xf32> -> vector<2x8x8xf32>
    "tpu.trace_stop"() : () -> ()
    %cst_34 = arith.constant dense<0xFF800000> : vector<2x8xf32>
    %71 = vector.multi_reduction <maximumf>, %70, %cst_34 [2] : vector<2x8x8xf32> to vector<2x8xf32>
    %72 = vector.shape_cast %71 : vector<2x8xf32> to vector<2x8x1xf32>
    %73 = vector.broadcast %72 : vector<2x8x1xf32> to vector<2x8x8xf32>
    %74 = arith.subf %70, %73 : vector<2x8x8xf32>
    %75 = math.exp %74 : vector<2x8x8xf32>
    %cst_35 = arith.constant dense<0.000000e+00> : vector<2x8xf32>
    %76 = vector.multi_reduction <add>, %75, %cst_35 [2] : vector<2x8x8xf32> to vector<2x8xf32>
    %77 = vector.shape_cast %76 : vector<2x8xf32> to vector<2x8x1xf32>
    %78 = tpu.reciprocal %77 {approx = true} : vector<2x8x1xf32> -> vector<2x8x1xf32>
    %79 = arith.mulf %77, %78 : vector<2x8x1xf32>
    %cst_36 = arith.constant 2.000000e+00 : f32
    %80 = vector.broadcast %cst_36 : f32 to vector<2x8x1xf32>
    %81 = arith.subf %80, %79 : vector<2x8x1xf32>
    %82 = arith.mulf %78, %81 : vector<2x8x1xf32>
    %83 = vector.broadcast %82 : vector<2x8x1xf32> to vector<2x8x8xf32>
    %84 = arith.mulf %75, %83 : vector<2x8x8xf32>
    "tpu.trace_start"() <{level = 10 : i32, message = "bsl,blh->bsh"}> : () -> ()
    %cst_37 = arith.constant dense<0.000000e+00> : vector<2x8x8xf32>
    %85 = tpu.matmul %84, %69, %cst_37 {dimension_numbers = #tpu.dot_dimension_numbers<[2], [1], [1], [2], [0, 0, 0, 1, 1, 2], [0], [0]>} : vector<2x8x8xf32>, vector<2x8x8xf32>, vector<2x8x8xf32> -> vector<2x8x8xf32>
    "tpu.trace_stop"() : () -> ()
    %86 = vector.extract_strided_slice %26 {offsets = [0, 0, 24], sizes = [2, 8, 8], strides = [1, 1, 1]} : vector<2x8x32xf32> to vector<2x8x8xf32>
    %87 = vector.extract_strided_slice %27 {offsets = [0, 0, 24], sizes = [2, 8, 8], strides = [1, 1, 1]} : vector<2x8x32xf32> to vector<2x8x8xf32>
    %88 = vector.extract_strided_slice %28 {offsets = [0, 0, 24], sizes = [2, 8, 8], strides = [1, 1, 1]} : vector<2x8x32xf32> to vector<2x8x8xf32>
    "tpu.trace_start"() <{level = 10 : i32, message = "bsh,blh->bsl"}> : () -> ()
    %cst_38 = arith.constant dense<0.000000e+00> : vector<2x8x8xf32>
    %89 = tpu.matmul %86, %87, %cst_38 {dimension_numbers = #tpu.dot_dimension_numbers<[2], [2], [1], [1], [0, 0, 0, 1, 1, 1], [0], [0]>} : vector<2x8x8xf32>, vector<2x8x8xf32>, vector<2x8x8xf32> -> vector<2x8x8xf32>
    "tpu.trace_stop"() : () -> ()
    %cst_39 = arith.constant dense<0xFF800000> : vector<2x8xf32>
    %90 = vector.multi_reduction <maximumf>, %89, %cst_39 [2] : vector<2x8x8xf32> to vector<2x8xf32>
    %91 = vector.shape_cast %90 : vector<2x8xf32> to vector<2x8x1xf32>
    %92 = vector.broadcast %91 : vector<2x8x1xf32> to vector<2x8x8xf32>
    %93 = arith.subf %89, %92 : vector<2x8x8xf32>
    %94 = math.exp %93 : vector<2x8x8xf32>
    %cst_40 = arith.constant dense<0.000000e+00> : vector<2x8xf32>
    %95 = vector.multi_reduction <add>, %94, %cst_40 [2] : vector<2x8x8xf32> to vector<2x8xf32>
    %96 = vector.shape_cast %95 : vector<2x8xf32> to vector<2x8x1xf32>
    %97 = tpu.reciprocal %96 {approx = true} : vector<2x8x1xf32> -> vector<2x8x1xf32>
    %98 = arith.mulf %96, %97 : vector<2x8x1xf32>
    %cst_41 = arith.constant 2.000000e+00 : f32
    %99 = vector.broadcast %cst_41 : f32 to vector<2x8x1xf32>
    %100 = arith.subf %99, %98 : vector<2x8x1xf32>
    %101 = arith.mulf %97, %100 : vector<2x8x1xf32>
    %102 = vector.broadcast %101 : vector<2x8x1xf32> to vector<2x8x8xf32>
    %103 = arith.mulf %94, %102 : vector<2x8x8xf32>
    "tpu.trace_start"() <{level = 10 : i32, message = "bsl,blh->bsh"}> : () -> ()
    %cst_42 = arith.constant dense<0.000000e+00> : vector<2x8x8xf32>
    %104 = tpu.matmul %103, %88, %cst_42 {dimension_numbers = #tpu.dot_dimension_numbers<[2], [1], [1], [2], [0, 0, 0, 1, 1, 2], [0], [0]>} : vector<2x8x8xf32>, vector<2x8x8xf32>, vector<2x8x8xf32> -> vector<2x8x8xf32>
    "tpu.trace_stop"() : () -> ()
    %105 = tpu.concatenate %47, %66, %85, %104 in 2 : vector<2x8x8xf32>, vector<2x8x8xf32>, vector<2x8x8xf32>, vector<2x8x8xf32> -> vector<2x8x32xf32>
    %106 = vector.shape_cast %105 : vector<2x8x32xf32> to vector<16x32xf32>
    %cst_43 = arith.constant dense<0.000000e+00> : vector<16x32xf32>
    %107 = tpu.matmul %106, %6, %cst_43 {dimension_numbers = #tpu.dot_dimension_numbers<[1], [0], [0], [1], [0, 0, 1, 1], [], []>} : vector<16x32xf32>, vector<32x32xf32>, vector<16x32xf32> -> vector<16x32xf32>
    %108 = vector.broadcast %10 : vector<1x32xf32> to vector<16x32xf32>
    %109 = arith.addf %107, %108 : vector<16x32xf32>
    %110 = arith.addf %0, %109 : vector<16x32xf32>
    %cst_44 = arith.constant dense<0.000000e+00> : vector<16xf32>
    %111 = vector.multi_reduction <add>, %110, %cst_44 [1] : vector<16x32xf32> to vector<16xf32>
    %112 = vector.shape_cast %111 : vector<16xf32> to vector<16x1xf32>
    %cst_45 = arith.constant 3.200000e+01 : f32
    %113 = vector.broadcast %cst_45 : f32 to vector<16x1xf32>
    %114 = arith.divf %112, %113 : vector<16x1xf32>
    %115 = vector.broadcast %114 : vector<16x1xf32> to vector<16x32xf32>
    %116 = arith.subf %110, %115 : vector<16x32xf32>
    %117 = arith.mulf %116, %116 : vector<16x32xf32>
    %cst_46 = arith.constant dense<0.000000e+00> : vector<16xf32>
    %118 = vector.multi_reduction <add>, %117, %cst_46 [1] : vector<16x32xf32> to vector<16xf32>
    %119 = vector.shape_cast %118 : vector<16xf32> to vector<16x1xf32>
    %cst_47 = arith.constant 3.200000e+01 : f32
    %120 = vector.broadcast %cst_47 : f32 to vector<16x1xf32>
    %121 = arith.divf %119, %120 : vector<16x1xf32>
    %122 = vector.broadcast %114 : vector<16x1xf32> to vector<16x32xf32>
    %123 = arith.subf %110, %122 : vector<16x32xf32>
    %cst_48 = arith.constant 9.99999974E-6 : f32
    %124 = vector.broadcast %cst_48 : f32 to vector<16x1xf32>
    %125 = arith.addf %121, %124 : vector<16x1xf32>
    %126 = math.rsqrt %125 : vector<16x1xf32>
    %127 = vector.broadcast %126 : vector<16x1xf32> to vector<16x32xf32>
    %128 = arith.mulf %123, %127 : vector<16x32xf32>
    %129 = vector.broadcast %11 : vector<1x32xf32> to vector<16x32xf32>
    %130 = arith.mulf %128, %129 : vector<16x32xf32>
    %131 = vector.broadcast %12 : vector<1x32xf32> to vector<16x32xf32>
    %132 = arith.addf %130, %131 : vector<16x32xf32>
    %c0_49 = arith.constant 0 : index
    %c0_50 = arith.constant 0 : index
    %133 = vector.load %arg4[%c0_49, %c0_50] : memref<32x64xf32, #tpu.memory_space<vmem>>, vector<32x64xf32>
    %cst_51 = arith.constant dense<0.000000e+00> : vector<16x64xf32>
    %134 = tpu.matmul %132, %133, %cst_51 {dimension_numbers = #tpu.dot_dimension_numbers<[1], [0], [0], [1], [0, 0, 1, 1], [], []>} : vector<16x32xf32>, vector<32x64xf32>, vector<16x64xf32> -> vector<16x64xf32>
    %135 = vector.broadcast %13 : vector<1x64xf32> to vector<16x64xf32>
    %136 = arith.addf %134, %135 : vector<16x64xf32>
    %cst_52 = arith.constant 0.000000e+00 : f32
    %137 = vector.broadcast %cst_52 : f32 to vector<16x64xf32>
    %138 = arith.maximumf %136, %137 : vector<16x64xf32>
    %c0_53 = arith.constant 0 : index
    %c0_54 = arith.constant 0 : index
    %139 = vector.load %arg5[%c0_53, %c0_54] : memref<64x32xf32, #tpu.memory_space<vmem>>, vector<64x32xf32>
    %cst_55 = arith.constant dense<0.000000e+00> : vector<16x32xf32>
    %140 = tpu.matmul %138, %139, %cst_55 {dimension_numbers = #tpu.dot_dimension_numbers<[1], [0], [0], [1], [0, 0, 1, 1], [], []>} : vector<16x64xf32>, vector<64x32xf32>, vector<16x32xf32> -> vector<16x32xf32>
    %141 = vector.broadcast %14 : vector<1x32xf32> to vector<16x32xf32>
    %142 = arith.addf %140, %141 : vector<16x32xf32>
    %143 = arith.addf %132, %142 : vector<16x32xf32>
    %cst_56 = arith.constant dense<0.000000e+00> : vector<16xf32>
    %144 = vector.multi_reduction <add>, %143, %cst_56 [1] : vector<16x32xf32> to vector<16xf32>
    %145 = vector.shape_cast %144 : vector<16xf32> to vector<16x1xf32>
    %cst_57 = arith.constant 3.200000e+01 : f32
    %146 = vector.broadcast %cst_57 : f32 to vector<16x1xf32>
    %147 = arith.divf %145, %146 : vector<16x1xf32>
    %148 = vector.broadcast %147 : vector<16x1xf32> to vector<16x32xf32>
    %149 = arith.subf %143, %148 : vector<16x32xf32>
    %150 = arith.mulf %149, %149 : vector<16x32xf32>
    %cst_58 = arith.constant dense<0.000000e+00> : vector<16xf32>
    %151 = vector.multi_reduction <add>, %150, %cst_58 [1] : vector<16x32xf32> to vector<16xf32>
    %152 = vector.shape_cast %151 : vector<16xf32> to vector<16x1xf32>
    %cst_59 = arith.constant 3.200000e+01 : f32
    %153 = vector.broadcast %cst_59 : f32 to vector<16x1xf32>
    %154 = arith.divf %152, %153 : vector<16x1xf32>
    %155 = vector.broadcast %147 : vector<16x1xf32> to vector<16x32xf32>
    %156 = arith.subf %143, %155 : vector<16x32xf32>
    %cst_60 = arith.constant 9.99999974E-6 : f32
    %157 = vector.broadcast %cst_60 : f32 to vector<16x1xf32>
    %158 = arith.addf %154, %157 : vector<16x1xf32>
    %159 = math.rsqrt %158 : vector<16x1xf32>
    %160 = vector.broadcast %159 : vector<16x1xf32> to vector<16x32xf32>
    %161 = arith.mulf %156, %160 : vector<16x32xf32>
    %162 = vector.broadcast %15 : vector<1x32xf32> to vector<16x32xf32>
    %163 = arith.mulf %161, %162 : vector<16x32xf32>
    %164 = vector.broadcast %16 : vector<1x32xf32> to vector<16x32xf32>
    %165 = arith.addf %163, %164 : vector<16x32xf32>
    %c0_61 = arith.constant 0 : index
    %c0_62 = arith.constant 0 : index
    %166 = vector.load %arg7[%c0_61, %c0_62] : memref<16x32xf32, #tpu.memory_space<vmem>>, vector<16x32xf32>
    tpu.vector_store %arg7[%c0_61, %c0_62], %165 {strides = array<i32>} : memref<16x32xf32, #tpu.memory_space<vmem>>, vector<16x32xf32>,
    return
  }
}

</mosaic_0001>

<llo_original>
// kernel: tpu_custom_call.1
$region0: #{tpu_custom_call.1}
  #allocation0 [shape = 'u32[]', space=smem, size = 0x4, offset = 0x4, fixed_abs, tag = 'smem constant byte address 0x4 - core index']
  #allocation1 [shape = 'u32[144,128]{1,0:T(1,128)}', space=vmem, size = 0x12000, scoped, tag = 'internal scratch']
  %s0 = inlined_call_operand.vmem [shape: f32[16,32], index: 0, kind: input, shape index: {}]
  %s1 = inlined_call_operand.vmem [shape: f32[16,32], index: 1, kind: input, shape index: {}]
  %s2 = inlined_call_operand.vmem [shape: f32[16,32], index: 2, kind: input, shape index: {}]
  %s3 = inlined_call_operand.vmem [shape: f32[128,32], index: 3, kind: input, shape index: {}]
  %s4 = inlined_call_operand.vmem [shape: f32[32,64], index: 4, kind: input, shape index: {}]
  %s5 = inlined_call_operand.vmem [shape: f32[64,32], index: 5, kind: input, shape index: {}]
  %s6 = inlined_call_operand.vmem [shape: f32[10,64], index: 6, kind: input, shape index: {}]
  %s7 = inlined_call_operand.hbm [shape: f32[16,32], index: 7, kind: output, shape index: {}]
  %s8 = sld [smem:[#allocation0]]
  $region38: #{tpu_custom_call.1} parent=0
    _
  %s10 = ssub.s32 1, %s8
  %s11 = scalar_select 0, %s10, %s8
  $region1: #{tpu_custom_call.1} parent=0
    #allocation2 [shape = 'u8[8192]{0}', space=vmem, size = 0x2000, scoped, tag = 'output window, operand 0, single buffered']
    #allocation3 [shape = 's32[1]{0}', space=sflag, size = 0x4, scoped, tag = 'scoped memory for tpu_custom_call.1']
    %12 = vsyncpa [#allocation3], 0
    // Predicated region
    $region2: #{tpu_custom_call.1} parent=1 // pred_check
      _
    $region3: #{tpu_custom_call.1} parent=1 // pred_check_branch
      %14 = sbr.rel (0) target = $region5
    $region4: #{tpu_custom_call.1} parent=1 // pred_region
      _
    $region5: #{tpu_custom_call.1} parent=1 // pred_fallthru
      _
    // Predicated region
    $region6: #{tpu_custom_call.1} parent=1 // pred_check
      _
    $region7: #{tpu_custom_call.1} parent=1 // pred_check_branch
      %16 = sbr.rel (0) target = $region9
    $region8: #{tpu_custom_call.1} parent=1 // pred_region
      _
    $region9: #{tpu_custom_call.1} parent=1 // pred_fallthru
      _
    // Predicated region
    $region10: #{tpu_custom_call.1} parent=1 // pred_check
      _
    $region11: #{tpu_custom_call.1} parent=1 // pred_check_branch
      %18 = sbr.rel (0) target = $region13
    $region12: #{tpu_custom_call.1} parent=1 // pred_region
      _
    $region13: #{tpu_custom_call.1} parent=1 // pred_fallthru
      _
    // Predicated region
    $region14: #{tpu_custom_call.1} parent=1 // pred_check
      _
    $region15: #{tpu_custom_call.1} parent=1 // pred_check_branch
      %20 = sbr.rel (0) target = $region17
    $region16: #{tpu_custom_call.1} parent=1 // pred_region
      _
    $region17: #{tpu_custom_call.1} parent=1 // pred_fallthru
      _
    // Predicated region
    $region18: #{tpu_custom_call.1} parent=1 // pred_check
      _
    $region19: #{tpu_custom_call.1} parent=1 // pred_check_branch
      %22 = sbr.rel (0) target = $region21
    $region20: #{tpu_custom_call.1} parent=1 // pred_region
      _
    $region21: #{tpu_custom_call.1} parent=1 // pred_fallthru
      _
    // Predicated region
    $region22: #{tpu_custom_call.1} parent=1 // pred_check
      _
    $region23: #{tpu_custom_call.1} parent=1 // pred_check_branch
      %24 = sbr.rel (0) target = $region25
    $region24: #{tpu_custom_call.1} parent=1 // pred_region
      _
    $region25: #{tpu_custom_call.1} parent=1 // pred_fallthru
      _
    // Predicated region
    $region26: #{tpu_custom_call.1} parent=1 // pred_check
      _
    $region27: #{tpu_custom_call.1} parent=1 // pred_check_branch
      %26 = sbr.rel (0) target = $region29
    $region28: #{tpu_custom_call.1} parent=1 // pred_region
      _
    $region29: #{tpu_custom_call.1} parent=1 // pred_fallthru
      _
    %v27 = vld [vmem:[%s0] sm:$0xff]
    %v28 = vld [vmem:[%s0 + $0x8] sm:$0xff]
    %v29 = vld [vmem:[%s1] sm:$0xff]
    %v30 = vld [vmem:[%s1 + $0x8] sm:$0xff]
    %v31 = vld [vmem:[%s2] sm:$0xff]
    %v32 = vld [vmem:[%s2 + $0x8] sm:$0xff]
    %v33 = vld [vmem:[%s3] sm:$0xff]
    %v34 = vld [vmem:[%s3 + $0x8] sm:$0xff]
    %v35 = vld [vmem:[%s3 + $0x10] sm:$0xff]
    %v36 = vld [vmem:[%s3 + $0x18] sm:$0xff]
    %v37 = vld [vmem:[%s3 + $0x20] sm:$0xff]
    %v38 = vld [vmem:[%s3 + $0x28] sm:$0xff]
    %v39 = vld [vmem:[%s3 + $0x30] sm:$0xff]
    %v40 = vld [vmem:[%s3 + $0x38] sm:$0xff]
    %v41 = vld [vmem:[%s3 + $0x40] sm:$0xff]
    %v42 = vld [vmem:[%s3 + $0x48] sm:$0xff]
    %v43 = vld [vmem:[%s3 + $0x50] sm:$0xff]
    %v44 = vld [vmem:[%s3 + $0x58] sm:$0xff]
    %v45 = vld [vmem:[%s3 + $0x60] sm:$0xff]
    %v46 = vld [vmem:[%s3 + $0x68] sm:$0xff]
    %v47 = vld [vmem:[%s3 + $0x70] sm:$0xff]
    %v48 = vld [vmem:[%s3 + $0x78] sm:$0xff]
    %v49 = vld [vmem:[%s6] sm:$0x1]
    %v50 = vld [vmem:[%s6 + $0x1] sm:$0x1]
    %v51 = vld [vmem:[%s6 + $0x2] sm:$0x1]
    %v52 = vld [vmem:[%s6 + $0x3] sm:$0x1]
    %v53 = vld [vmem:[%s6 + $0x4] sm:$0x1]
    %v54 = vld [vmem:[%s6 + $0x5] sm:$0x1]
    %v55 = vld [vmem:[%s6 + $0x6] sm:$0x1]
    %v56 = vld [vmem:[%s6 + $0x7] sm:$0x1]
    %v57 = vld [vmem:[%s6 + $0x8] sm:$0x1]
    %v58 = vld [vmem:[%s6 + $0x9] sm:$0x1]
    %v59 = vlaneseq
    %v60 = vshrl.u32 %v59, 7
    %v61 = vsub.s32 0, %v60
    %v62 = vrot.slane %v49, %v61
    %vm63 = vcmask 261120
    %v65 = vsel %vm63, %v27, 0
    %v68 = vsel %vm63, %v28, 0
    %70 = vmatprep.subr.mxu0 0.0
    %71 = vmatpush1.msra.mxu0 %v33
    %72 = vmatprep.subr.mxu0 0.0
    %73 = vmatpush1.msra.mxu0 %v34
    %74 = vmatprep.subr.mxu0 0.0
    %75 = vmatpush1.msra.mxu0 %v35
    %76 = vmatprep.subr.mxu0 0.0
    %77 = vmatpush1.msra.mxu0 %v36
    %78 = vmatprep.subr.mxu0 0.0
    %79 = vmatpush1.msra.mxu0 0.0
    %80 = vmatprep.subr.mxu0 0.0
    %81 = vmatpush1.msra.mxu0 0.0
    %82 = vmatprep.subr.mxu0 0.0
    %83 = vmatpush1.msra.mxu0 0.0
    %84 = vmatprep.subr.mxu0 0.0
    %85 = vmatpush1.msra.mxu0 0.0
    %86 = vmatprep.subr.mxu0 0.0
    %87 = vmatpush1.msra.mxu0 0.0
    %88 = vmatprep.subr.mxu0 0.0
    %89 = vmatpush1.msra.mxu0 0.0
    %90 = vmatprep.subr.mxu0 0.0
    %91 = vmatpush1.msra.mxu0 0.0
    %92 = vmatprep.subr.mxu0 0.0
    %93 = vmatpush1.msra.mxu0 0.0
    %94 = vmatprep.subr.mxu0 0.0
    %95 = vmatpush1.msra.mxu0 0.0
    %96 = vmatprep.subr.mxu0 0.0
    %97 = vmatpush1.msra.mxu0 0.0
    %98 = vmatprep.subr.mxu0 0.0
    %99 = vmatpush1.msra.mxu0 0.0
    %100 = vmatprep.subr.mxu0 0.0
    %101 = vmatpush1.msra.mxu0 0.0
    %102 = vmatprep.subr.mxu0 0.0
    %103 = vmatpush1.msra.mxu0 0.0
    %104 = vmatprep.subr.mxu0 0.0
    %105 = vmatpush1.msra.mxu0 0.0
    %106 = vmatprep.subr.mxu0 0.0
    %107 = vmatpush1.msra.mxu0 0.0
    %108 = vmatprep.subr.mxu0 0.0
    %109 = vmatpush1.msra.mxu0 0.0
    %110 = vmatprep.subr.mxu0 0.0
    %111 = vmatpush1.msra.mxu0 0.0
    %112 = vmatprep.subr.mxu0 0.0
    %113 = vmatpush1.msra.mxu0 0.0
    %114 = vmatprep.subr.mxu0 0.0
    %115 = vmatpush1.msra.mxu0 0.0
    %116 = vmatprep.subr.mxu0 0.0
    %117 = vmatpush1.msra.mxu0 0.0
    %118 = vmatprep.subr.mxu0 0.0
    %119 = vmatpush1.msra.mxu0 0.0
    %120 = vmatprep.subr.mxu0 0.0
    %121 = vmatpush1.msra.mxu0 0.0
    %122 = vmatprep.subr.mxu0 0.0
    %123 = vmatpush1.msra.mxu0 0.0
    %124 = vmatprep.subr.mxu0 0.0
    %125 = vmatpush1.msra.mxu0 0.0
    %126 = vmatprep.subr.mxu0 0.0
    %127 = vmatpush1.msra.mxu0 0.0
    %128 = vmatprep.subr.mxu0 0.0
    %129 = vmatpush1.msra.mxu0 0.0
    %130 = vmatprep.subr.mxu0 0.0
    %131 = vmatpush1.msra.mxu0 0.0
    %132 = vmatprep.subr.mxu0 0.0
    %133 = vmatpush1.msra.mxu0 0.0
    %134 = vmatprep.mubr.f32.mxu0 0.0
    %135 = vmatmul.mubr.f32.gmra.mrb[0].mxu0 %v65
    %v136 = vpop.f32.mrb[0].mxu0
    %v137 = vadd.f32 %v62, %v136
    %v138 = vpop.f32.mrb[0].mxu0
    %139 = vmatprep.mubr.f32.mxu0 0.0
    %140 = vmatmul.mubr.f32.gmra.mrb[0].mxu0 %v68
    %v141 = vpop.f32.mrb[0].mxu0
    %v142 = vadd.f32 %v62, %v141
    %v143 = vpop.f32.mrb[0].mxu0
    %144 = vdwg.mxu0
    %v145 = vlaneseq
    %v146 = vshrl.u32 %v145, 7
    %v147 = vsub.s32 0, %v146
    %v148 = vrot.slane %v50, %v147
    %v150 = vsel %vm63, %v29, 0
    %v153 = vsel %vm63, %v30, 0
    %155 = vmatprep.subr.mxu0 0.0
    %156 = vmatpush1.msra.mxu0 %v37
    %157 = vmatprep.subr.mxu0 0.0
    %158 = vmatpush1.msra.mxu0 %v38
    %159 = vmatprep.subr.mxu0 0.0
    %160 = vmatpush1.msra.mxu0 %v39
    %161 = vmatprep.subr.mxu0 0.0
    %162 = vmatpush1.msra.mxu0 %v40
    %163 = vmatprep.subr.mxu0 0.0
    %164 = vmatpush1.msra.mxu0 0.0
    %165 = vmatprep.subr.mxu0 0.0
    %166 = vmatpush1.msra.mxu0 0.0
    %167 = vmatprep.subr.mxu0 0.0
    %168 = vmatpush1.msra.mxu0 0.0
    %169 = vmatprep.subr.mxu0 0.0
    %170 = vmatpush1.msra.mxu0 0.0
    %171 = vmatprep.subr.mxu0 0.0
    %172 = vmatpush1.msra.mxu0 0.0
    %173 = vmatprep.subr.mxu0 0.0
    %174 = vmatpush1.msra.mxu0 0.0
    %175 = vmatprep.subr.mxu0 0.0
    %176 = vmatpush1.msra.mxu0 0.0
    %177 = vmatprep.subr.mxu0 0.0
    %178 = vmatpush1.msra.mxu0 0.0
    %179 = vmatprep.subr.mxu0 0.0
    %180 = vmatpush1.msra.mxu0 0.0
    %181 = vmatprep.subr.mxu0 0.0
    %182 = vmatpush1.msra.mxu0 0.0
    %183 = vmatprep.subr.mxu0 0.0
    %184 = vmatpush1.msra.mxu0 0.0
    %185 = vmatprep.subr.mxu0 0.0
    %186 = vmatpush1.msra.mxu0 0.0
    %187 = vmatprep.subr.mxu0 0.0
    %188 = vmatpush1.msra.mxu0 0.0
    %189 = vmatprep.subr.mxu0 0.0
    %190 = vmatpush1.msra.mxu0 0.0
    %191 = vmatprep.subr.mxu0 0.0
    %192 = vmatpush1.msra.mxu0 0.0
    %193 = vmatprep.subr.mxu0 0.0
    %194 = vmatpush1.msra.mxu0 0.0
    %195 = vmatprep.subr.mxu0 0.0
    %196 = vmatpush1.msra.mxu0 0.0
    %197 = vmatprep.subr.mxu0 0.0
    %198 = vmatpush1.msra.mxu0 0.0
    %199 = vmatprep.subr.mxu0 0.0
    %200 = vmatpush1.msra.mxu0 0.0
    %201 = vmatprep.subr.mxu0 0.0
    %202 = vmatpush1.msra.mxu0 0.0
    %203 = vmatprep.subr.mxu0 0.0
    %204 = vmatpush1.msra.mxu0 0.0
    %205 = vmatprep.subr.mxu0 0.0
    %206 = vmatpush1.msra.mxu0 0.0
    %207 = vmatprep.subr.mxu0 0.0
    %208 = vmatpush1.msra.mxu0 0.0
    %209 = vmatprep.subr.mxu0 0.0
    %210 = vmatpush1.msra.mxu0 0.0
    %211 = vmatprep.subr.mxu0 0.0
    %212 = vmatpush1.msra.mxu0 0.0
    %213 = vmatprep.subr.mxu0 0.0
    %214 = vmatpush1.msra.mxu0 0.0
    %215 = vmatprep.subr.mxu0 0.0
    %216 = vmatpush1.msra.mxu0 0.0
    %217 = vmatprep.subr.mxu0 0.0
    %218 = vmatpush1.msra.mxu0 0.0
    %219 = vmatprep.mubr.f32.mxu0 0.0
    %220 = vmatmul.mubr.f32.gmra.mrb[0].mxu0 %v150
    %v221 = vpop.f32.mrb[0].mxu0
    %v222 = vadd.f32 %v148, %v221
    %v223 = vpop.f32.mrb[0].mxu0
    %224 = vmatprep.mubr.f32.mxu0 0.0
    %225 = vmatmul.mubr.f32.gmra.mrb[0].mxu0 %v153
    %v226 = vpop.f32.mrb[0].mxu0
    %v227 = vadd.f32 %v148, %v226
    %v228 = vpop.f32.mrb[0].mxu0
    %229 = vdwg.mxu0
    %v230 = vlaneseq
    %v231 = vshrl.u32 %v230, 7
    %v232 = vsub.s32 0, %v231
    %v233 = vrot.slane %v51, %v232
    %v235 = vsel %vm63, %v31, 0
    %v238 = vsel %vm63, %v32, 0
    %240 = vmatprep.subr.mxu0 0.0
    %241 = vmatpush1.msra.mxu0 %v41
    %242 = vmatprep.subr.mxu0 0.0
    %243 = vmatpush1.msra.mxu0 %v42
    %244 = vmatprep.subr.mxu0 0.0
    %245 = vmatpush1.msra.mxu0 %v43
    %246 = vmatprep.subr.mxu0 0.0
    %247 = vmatpush1.msra.mxu0 %v44
    %248 = vmatprep.subr.mxu0 0.0
    %249 = vmatpush1.msra.mxu0 0.0
    %250 = vmatprep.subr.mxu0 0.0
    %251 = vmatpush1.msra.mxu0 0.0
    %252 = vmatprep.subr.mxu0 0.0
    %253 = vmatpush1.msra.mxu0 0.0
    %254 = vmatprep.subr.mxu0 0.0
    %255 = vmatpush1.msra.mxu0 0.0
    %256 = vmatprep.subr.mxu0 0.0
    %257 = vmatpush1.msra.mxu0 0.0
    %258 = vmatprep.subr.mxu0 0.0
    %259 = vmatpush1.msra.mxu0 0.0
    %260 = vmatprep.subr.mxu0 0.0
    %261 = vmatpush1.msra.mxu0 0.0
    %262 = vmatprep.subr.mxu0 0.0
    %263 = vmatpush1.msra.mxu0 0.0
    %264 = vmatprep.subr.mxu0 0.0
    %265 = vmatpush1.msra.mxu0 0.0
    %266 = vmatprep.subr.mxu0 0.0
    %267 = vmatpush1.msra.mxu0 0.0
    %268 = vmatprep.subr.mxu0 0.0
    %269 = vmatpush1.msra.mxu0 0.0
    %270 = vmatprep.subr.mxu0 0.0
    %271 = vmatpush1.msra.mxu0 0.0
    %272 = vmatprep.subr.mxu0 0.0
    %273 = vmatpush1.msra.mxu0 0.0
    %274 = vmatprep.subr.mxu0 0.0
    %275 = vmatpush1.msra.mxu0 0.0
    %276 = vmatprep.subr.mxu0 0.0
    %277 = vmatpush1.msra.mxu0 0.0
    %278 = vmatprep.subr.mxu0 0.0
    %279 = vmatpush1.msra.mxu0 0.0
    %280 = vmatprep.subr.mxu0 0.0
    %281 = vmatpush1.msra.mxu0 0.0
    %282 = vmatprep.subr.mxu0 0.0
    %283 = vmatpush1.msra.mxu0 0.0
    %284 = vmatprep.subr.mxu0 0.0
    %285 = vmatpush1.msra.mxu0 0.0
    %286 = vmatprep.subr.mxu0 0.0
    %287 = vmatpush1.msra.mxu0 0.0
    %288 = vmatprep.subr.mxu0 0.0
    %289 = vmatpush1.msra.mxu0 0.0
    %290 = vmatprep.subr.mxu0 0.0
    %291 = vmatpush1.msra.mxu0 0.0
    %292 = vmatprep.subr.mxu0 0.0
    %293 = vmatpush1.msra.mxu0 0.0
    %294 = vmatprep.subr.mxu0 0.0
    %295 = vmatpush1.msra.mxu0 0.0
    %296 = vmatprep.subr.mxu0 0.0
    %297 = vmatpush1.msra.mxu0 0.0
    %298 = vmatprep.subr.mxu0 0.0
    %299 = vmatpush1.msra.mxu0 0.0
    %300 = vmatprep.subr.mxu0 0.0
    %301 = vmatpush1.msra.mxu0 0.0
    %302 = vmatprep.subr.mxu0 0.0
    %303 = vmatpush1.msra.mxu0 0.0
    %304 = vmatprep.mubr.f32.mxu0 0.0
    %305 = vmatmul.mubr.f32.gmra.mrb[0].mxu0 %v235
    %v306 = vpop.f32.mrb[0].mxu0
    %v307 = vadd.f32 %v233, %v306
    %v308 = vpop.f32.mrb[0].mxu0
    %309 = vmatprep.mubr.f32.mxu0 0.0
    %310 = vmatmul.mubr.f32.gmra.mrb[0].mxu0 %v238
    %v311 = vpop.f32.mrb[0].mxu0
    %v312 = vadd.f32 %v233, %v311
    %v313 = vpop.f32.mrb[0].mxu0
    %314 = vdwg.mxu0
    %vm315 = vcmask 64512
    %v317 = vsel %vm315, %v137, 0
    %v320 = vsel %vm315, %v222, 0
    %322 = vmatprep.subr.mxu0 0.0
    %323 = vmatpush1.xpose.msra.mxu0 %v320
    %324 = vmatprep.subr.mxu0 0.0
    %325 = vmatpush1.xpose.msra.mxu0 0.0
    %326 = vmatprep.subr.mxu0 0.0
    %327 = vmatpush1.xpose.msra.mxu0 0.0
    %328 = vmatprep.subr.mxu0 0.0
    %329 = vmatpush1.xpose.msra.mxu0 0.0
    %330 = vmatprep.subr.mxu0 0.0
    %331 = vmatpush1.xpose.msra.mxu0 0.0
    %332 = vmatprep.subr.mxu0 0.0
    %333 = vmatpush1.xpose.msra.mxu0 0.0
    %334 = vmatprep.subr.mxu0 0.0
    %335 = vmatpush1.xpose.msra.mxu0 0.0
    %336 = vmatprep.subr.mxu0 0.0
    %337 = vmatpush1.xpose.msra.mxu0 0.0
    %338 = vmatprep.subr.mxu0 0.0
    %339 = vmatpush1.xpose.msra.mxu0 0.0
    %340 = vmatprep.subr.mxu0 0.0
    %341 = vmatpush1.xpose.msra.mxu0 0.0
    %342 = vmatprep.subr.mxu0 0.0
    %343 = vmatpush1.xpose.msra.mxu0 0.0
    %344 = vmatprep.subr.mxu0 0.0
    %345 = vmatpush1.xpose.msra.mxu0 0.0
    %346 = vmatprep.subr.mxu0 0.0
    %347 = vmatpush1.xpose.msra.mxu0 0.0
    %348 = vmatprep.subr.mxu0 0.0
    %349 = vmatpush1.xpose.msra.mxu0 0.0
    %350 = vmatprep.subr.mxu0 0.0
    %351 = vmatpush1.xpose.msra.mxu0 0.0
    %352 = vmatprep.subr.mxu0 0.0
    %353 = vmatpush1.xpose.msra.mxu0 0.0
    %354 = vmatprep.subr.mxu0 0.0
    %355 = vmatpush1.xpose.msra.mxu0 0.0
    %356 = vmatprep.subr.mxu0 0.0
    %357 = vmatpush1.xpose.msra.mxu0 0.0
    %358 = vmatprep.subr.mxu0 0.0
    %359 = vmatpush1.xpose.msra.mxu0 0.0
    %360 = vmatprep.subr.mxu0 0.0
    %361 = vmatpush1.xpose.msra.mxu0 0.0
    %362 = vmatprep.subr.mxu0 0.0
    %363 = vmatpush1.xpose.msra.mxu0 0.0
    %364 = vmatprep.subr.mxu0 0.0
    %365 = vmatpush1.xpose.msra.mxu0 0.0
    %366 = vmatprep.subr.mxu0 0.0
    %367 = vmatpush1.xpose.msra.mxu0 0.0
    %368 = vmatprep.subr.mxu0 0.0
    %369 = vmatpush1.xpose.msra.mxu0 0.0
    %370 = vmatprep.subr.mxu0 0.0
    %371 = vmatpush1.xpose.msra.mxu0 0.0
    %372 = vmatprep.subr.mxu0 0.0
    %373 = vmatpush1.xpose.msra.mxu0 0.0
    %374 = vmatprep.subr.mxu0 0.0
    %375 = vmatpush1.xpose.msra.mxu0 0.0
    %376 = vmatprep.subr.mxu0 0.0
    %377 = vmatpush1.xpose.msra.mxu0 0.0
    %378 = vmatprep.subr.mxu0 0.0
    %379 = vmatpush1.xpose.msra.mxu0 0.0
    %380 = vmatprep.subr.mxu0 0.0
    %381 = vmatpush1.xpose.msra.mxu0 0.0
    %382 = vmatprep.subr.mxu0 0.0
    %383 = vmatpush1.xpose.msra.mxu0 0.0
    %384 = vmatprep.subr.mxu0 0.0
    %385 = vmatpush1.xpose.msra.mxu0 0.0
    %386 = vmatprep.mubr.f32.mxu0 0.0
    %387 = vmatmul.mubr.f32.gmra.mrb[0].mxu0 %v317
    %v388 = vpop.f32.mrb[0].mxu0
    %v389 = vadd.f32 0.0, %v388
    %v390 = vpop.f32.mrb[0].mxu0
    %391 = vdwg.mxu0
    %v393 = vsel %vm315, %v142, 0
    %v396 = vsel %vm315, %v227, 0
    %398 = vmatprep.subr.mxu0 0.0
    %399 = vmatpush1.xpose.msra.mxu0 %v396
    %400 = vmatprep.subr.mxu0 0.0
    %401 = vmatpush1.xpose.msra.mxu0 0.0
    %402 = vmatprep.subr.mxu0 0.0
    %403 = vmatpush1.xpose.msra.mxu0 0.0
    %404 = vmatprep.subr.mxu0 0.0
    %405 = vmatpush1.xpose.msra.mxu0 0.0
    %406 = vmatprep.subr.mxu0 0.0
    %407 = vmatpush1.xpose.msra.mxu0 0.0
    %408 = vmatprep.subr.mxu0 0.0
    %409 = vmatpush1.xpose.msra.mxu0 0.0
    %410 = vmatprep.subr.mxu0 0.0
    %411 = vmatpush1.xpose.msra.mxu0 0.0
    %412 = vmatprep.subr.mxu0 0.0
    %413 = vmatpush1.xpose.msra.mxu0 0.0
    %414 = vmatprep.subr.mxu0 0.0
    %415 = vmatpush1.xpose.msra.mxu0 0.0
    %416 = vmatprep.subr.mxu0 0.0
    %417 = vmatpush1.xpose.msra.mxu0 0.0
    %418 = vmatprep.subr.mxu0 0.0
    %419 = vmatpush1.xpose.msra.mxu0 0.0
    %420 = vmatprep.subr.mxu0 0.0
    %421 = vmatpush1.xpose.msra.mxu0 0.0
    %422 = vmatprep.subr.mxu0 0.0
    %423 = vmatpush1.xpose.msra.mxu0 0.0
    %424 = vmatprep.subr.mxu0 0.0
    %425 = vmatpush1.xpose.msra.mxu0 0.0
    %426 = vmatprep.subr.mxu0 0.0
    %427 = vmatpush1.xpose.msra.mxu0 0.0
    %428 = vmatprep.subr.mxu0 0.0
    %429 = vmatpush1.xpose.msra.mxu0 0.0
    %430 = vmatprep.subr.mxu0 0.0
    %431 = vmatpush1.xpose.msra.mxu0 0.0
    %432 = vmatprep.subr.mxu0 0.0
    %433 = vmatpush1.xpose.msra.mxu0 0.0
    %434 = vmatprep.subr.mxu0 0.0
    %435 = vmatpush1.xpose.msra.mxu0 0.0
    %436 = vmatprep.subr.mxu0 0.0
    %437 = vmatpush1.xpose.msra.mxu0 0.0
    %438 = vmatprep.subr.mxu0 0.0
    %439 = vmatpush1.xpose.msra.mxu0 0.0
    %440 = vmatprep.subr.mxu0 0.0
    %441 = vmatpush1.xpose.msra.mxu0 0.0
    %442 = vmatprep.subr.mxu0 0.0
    %443 = vmatpush1.xpose.msra.mxu0 0.0
    %444 = vmatprep.subr.mxu0 0.0
    %445 = vmatpush1.xpose.msra.mxu0 0.0
    %446 = vmatprep.subr.mxu0 0.0
    %447 = vmatpush1.xpose.msra.mxu0 0.0
    %448 = vmatprep.subr.mxu0 0.0
    %449 = vmatpush1.xpose.msra.mxu0 0.0
    %450 = vmatprep.subr.mxu0 0.0
    %451 = vmatpush1.xpose.msra.mxu0 0.0
    %452 = vmatprep.subr.mxu0 0.0
    %453 = vmatpush1.xpose.msra.mxu0 0.0
    %454 = vmatprep.subr.mxu0 0.0
    %455 = vmatpush1.xpose.msra.mxu0 0.0
    %456 = vmatprep.subr.mxu0 0.0
    %457 = vmatpush1.xpose.msra.mxu0 0.0
    %458 = vmatprep.subr.mxu0 0.0
    %459 = vmatpush1.xpose.msra.mxu0 0.0
    %460 = vmatprep.subr.mxu0 0.0
    %461 = vmatpush1.xpose.msra.mxu0 0.0
    %462 = vmatprep.mubr.f32.mxu0 0.0
    %463 = vmatmul.mubr.f32.gmra.mrb[0].mxu0 %v393
    %v464 = vpop.f32.mrb[0].mxu0
    %v465 = vadd.f32 0.0, %v464
    %v466 = vpop.f32.mrb[0].mxu0
    %467 = vdwg.mxu0
    %v468 = vsel %vm315, %v389, -inf
    %469 = vmax.xlane.f32.xlu0 %v468
    %v470 = vpop.xlane.xlu0 %469
    %v471 = vsel %vm315, %v465, -inf
    %472 = vmax.xlane.f32.xlu0 %v471
    %v473 = vpop.xlane.xlu0 %472
    %v474 = vsub.f32 %v389, %v470
    %v475 = vsub.f32 %v465, %v473
    %v476 = vmul.f32 %v474, 1.442695
    %v477 = vpow.pop %v476
    %v478 = vmul.f32 %v475, 1.442695
    %v479 = vpow.pop %v478
    %v480 = vsel %vm315, %v477, 0.0
    %481 = vadd.xlane.f32.xlu0 %v480
    %v482 = vpop.xlane.xlu0 %481
    %v483 = vsel %vm315, %v479, 0.0
    %484 = vadd.xlane.f32.xlu0 %v483
    %v485 = vpop.xlane.xlu0 %484
    %v486 = vrcp.pop %v482
    %v487 = vrcp.pop %v485
    %v488 = vmul.f32 %v482, %v486
    %v489 = vmul.f32 %v485, %v487
    %v490 = vsub.f32 2.0, %v488
    %v491 = vsub.f32 2.0, %v489
    %v492 = vmul.f32 %v486, %v490
    %v493 = vmul.f32 %v487, %v491
    %v494 = vmul.f32 %v477, %v492
    %v495 = vmul.f32 %v479, %v493
    %v497 = vsel %vm315, %v494, 0
    %499 = vmatprep.subr.mxu0 0.0
    %500 = vmatpush1.msra.mxu0 %v307
    %501 = vmatprep.subr.mxu0 0.0
    %502 = vmatpush1.msra.mxu0 0.0
    %503 = vmatprep.subr.mxu0 0.0
    %504 = vmatpush1.msra.mxu0 0.0
    %505 = vmatprep.subr.mxu0 0.0
    %506 = vmatpush1.msra.mxu0 0.0
    %507 = vmatprep.subr.mxu0 0.0
    %508 = vmatpush1.msra.mxu0 0.0
    %509 = vmatprep.subr.mxu0 0.0
    %510 = vmatpush1.msra.mxu0 0.0
    %511 = vmatprep.subr.mxu0 0.0
    %512 = vmatpush1.msra.mxu0 0.0
    %513 = vmatprep.subr.mxu0 0.0
    %514 = vmatpush1.msra.mxu0 0.0
    %515 = vmatprep.subr.mxu0 0.0
    %516 = vmatpush1.msra.mxu0 0.0
    %517 = vmatprep.subr.mxu0 0.0
    %518 = vmatpush1.msra.mxu0 0.0
    %519 = vmatprep.subr.mxu0 0.0
    %520 = vmatpush1.msra.mxu0 0.0
    %521 = vmatprep.subr.mxu0 0.0
    %522 = vmatpush1.msra.mxu0 0.0
    %523 = vmatprep.subr.mxu0 0.0
    %524 = vmatpush1.msra.mxu0 0.0
    %525 = vmatprep.subr.mxu0 0.0
    %526 = vmatpush1.msra.mxu0 0.0
    %527 = vmatprep.subr.mxu0 0.0
    %528 = vmatpush1.msra.mxu0 0.0
    %529 = vmatprep.subr.mxu0 0.0
    %530 = vmatpush1.msra.mxu0 0.0
    %531 = vmatprep.subr.mxu0 0.0
    %532 = vmatpush1.msra.mxu0 0.0
    %533 = vmatprep.subr.mxu0 0.0
    %534 = vmatpush1.msra.mxu0 0.0
    %535 = vmatprep.subr.mxu0 0.0
    %536 = vmatpush1.msra.mxu0 0.0
    %537 = vmatprep.subr.mxu0 0.0
    %538 = vmatpush1.msra.mxu0 0.0
    %539 = vmatprep.subr.mxu0 0.0
    %540 = vmatpush1.msra.mxu0 0.0
    %541 = vmatprep.subr.mxu0 0.0
    %542 = vmatpush1.msra.mxu0 0.0
    %543 = vmatprep.subr.mxu0 0.0
    %544 = vmatpush1.msra.mxu0 0.0
    %545 = vmatprep.subr.mxu0 0.0
    %546 = vmatpush1.msra.mxu0 0.0
    %547 = vmatprep.subr.mxu0 0.0
    %548 = vmatpush1.msra.mxu0 0.0
    %549 = vmatprep.subr.mxu0 0.0
    %550 = vmatpush1.msra.mxu0 0.0
    %551 = vmatprep.subr.mxu0 0.0
    %552 = vmatpush1.msra.mxu0 0.0
    %553 = vmatprep.subr.mxu0 0.0
    %554 = vmatpush1.msra.mxu0 0.0
    %555 = vmatprep.subr.mxu0 0.0
    %556 = vmatpush1.msra.mxu0 0.0
    %557 = vmatprep.subr.mxu0 0.0
    %558 = vmatpush1.msra.mxu0 0.0
    %559 = vmatprep.subr.mxu0 0.0
    %560 = vmatpush1.msra.mxu0 0.0
    %561 = vmatprep.subr.mxu0 0.0
    %562 = vmatpush1.msra.mxu0 0.0
    %563 = vmatprep.mubr.f32.mxu0 0.0
    %564 = vmatmul.mubr.f32.gmra.mrb[0].mxu0 %v497
    %v565 = vpop.f32.mrb[0].mxu0
    %v566 = vadd.f32 0.0, %v565
    %v567 = vpop.f32.mrb[0].mxu0
    %568 = vdwg.mxu0
    %v570 = vsel %vm315, %v495, 0
    %572 = vmatprep.subr.mxu0 0.0
    %573 = vmatpush1.msra.mxu0 %v312
    %574 = vmatprep.subr.mxu0 0.0
    %575 = vmatpush1.msra.mxu0 0.0
    %576 = vmatprep.subr.mxu0 0.0
    %577 = vmatpush1.msra.mxu0 0.0
    %578 = vmatprep.subr.mxu0 0.0
    %579 = vmatpush1.msra.mxu0 0.0
    %580 = vmatprep.subr.mxu0 0.0
    %581 = vmatpush1.msra.mxu0 0.0
    %582 = vmatprep.subr.mxu0 0.0
    %583 = vmatpush1.msra.mxu0 0.0
    %584 = vmatprep.subr.mxu0 0.0
    %585 = vmatpush1.msra.mxu0 0.0
    %586 = vmatprep.subr.mxu0 0.0
    %587 = vmatpush1.msra.mxu0 0.0
    %588 = vmatprep.subr.mxu0 0.0
    %589 = vmatpush1.msra.mxu0 0.0
    %590 = vmatprep.subr.mxu0 0.0
    %591 = vmatpush1.msra.mxu0 0.0
    %592 = vmatprep.subr.mxu0 0.0
    %593 = vmatpush1.msra.mxu0 0.0
    %594 = vmatprep.subr.mxu0 0.0
    %595 = vmatpush1.msra.mxu0 0.0
    %596 = vmatprep.subr.mxu0 0.0
    %597 = vmatpush1.msra.mxu0 0.0
    %598 = vmatprep.subr.mxu0 0.0
    %599 = vmatpush1.msra.mxu0 0.0
    %600 = vmatprep.subr.mxu0 0.0
    %601 = vmatpush1.msra.mxu0 0.0
    %602 = vmatprep.subr.mxu0 0.0
    %603 = vmatpush1.msra.mxu0 0.0
    %604 = vmatprep.subr.mxu0 0.0
    %605 = vmatpush1.msra.mxu0 0.0
    %606 = vmatprep.subr.mxu0 0.0
    %607 = vmatpush1.msra.mxu0 0.0
    %608 = vmatprep.subr.mxu0 0.0
    %609 = vmatpush1.msra.mxu0 0.0
    %610 = vmatprep.subr.mxu0 0.0
    %611 = vmatpush1.msra.mxu0 0.0
    %612 = vmatprep.subr.mxu0 0.0
    %613 = vmatpush1.msra.mxu0 0.0
    %614 = vmatprep.subr.mxu0 0.0
    %615 = vmatpush1.msra.mxu0 0.0
    %616 = vmatprep.subr.mxu0 0.0
    %617 = vmatpush1.msra.mxu0 0.0
    %618 = vmatprep.subr.mxu0 0.0
    %619 = vmatpush1.msra.mxu0 0.0
    %620 = vmatprep.subr.mxu0 0.0
    %621 = vmatpush1.msra.mxu0 0.0
    %622 = vmatprep.subr.mxu0 0.0
    %623 = vmatpush1.msra.mxu0 0.0
    %624 = vmatprep.subr.mxu0 0.0
    %625 = vmatpush1.msra.mxu0 0.0
    %626 = vmatprep.subr.mxu0 0.0
    %627 = vmatpush1.msra.mxu0 0.0
    %628 = vmatprep.subr.mxu0 0.0
    %629 = vmatpush1.msra.mxu0 0.0
    %630 = vmatprep.subr.mxu0 0.0
    %631 = vmatpush1.msra.mxu0 0.0
    %632 = vmatprep.subr.mxu0 0.0
    %633 = vmatpush1.msra.mxu0 0.0
    %634 = vmatprep.subr.mxu0 0.0
    %635 = vmatpush1.msra.mxu0 0.0
    %636 = vmatprep.mubr.f32.mxu0 0.0
    %637 = vmatmul.mubr.f32.gmra.mrb[0].mxu0 %v570
    %v638 = vpop.f32.mrb[0].mxu0
    %v639 = vadd.f32 0.0, %v638
    %v640 = vpop.f32.mrb[0].mxu0
    %641 = vdwg.mxu0
    %642 = vrot.lane.b32.xlu0 %v137, 120
    %v643 = vpop.permute.xlu0 %642
    %644 = vrot.lane.b32.xlu0 %v222, 120
    %v645 = vpop.permute.xlu0 %644
    %v646 = vsel %vm315, %v643, 0
    %v648 = vsel %vm315, %v645, 0
    %650 = vmatprep.subr.mxu0 0.0
    %651 = vmatpush1.xpose.msra.mxu0 %v648
    %652 = vmatprep.subr.mxu0 0.0
    %653 = vmatpush1.xpose.msra.mxu0 0.0
    %654 = vmatprep.subr.mxu0 0.0
    %655 = vmatpush1.xpose.msra.mxu0 0.0
    %656 = vmatprep.subr.mxu0 0.0
    %657 = vmatpush1.xpose.msra.mxu0 0.0
    %658 = vmatprep.subr.mxu0 0.0
    %659 = vmatpush1.xpose.msra.mxu0 0.0
    %660 = vmatprep.subr.mxu0 0.0
    %661 = vmatpush1.xpose.msra.mxu0 0.0
    %662 = vmatprep.subr.mxu0 0.0
    %663 = vmatpush1.xpose.msra.mxu0 0.0
    %664 = vmatprep.subr.mxu0 0.0
    %665 = vmatpush1.xpose.msra.mxu0 0.0
    %666 = vmatprep.subr.mxu0 0.0
    %667 = vmatpush1.xpose.msra.mxu0 0.0
    %668 = vmatprep.subr.mxu0 0.0
    %669 = vmatpush1.xpose.msra.mxu0 0.0
    %670 = vmatprep.subr.mxu0 0.0
    %671 = vmatpush1.xpose.msra.mxu0 0.0
    %672 = vmatprep.subr.mxu0 0.0
    %673 = vmatpush1.xpose.msra.mxu0 0.0
    %674 = vmatprep.subr.mxu0 0.0
    %675 = vmatpush1.xpose.msra.mxu0 0.0
    %676 = vmatprep.subr.mxu0 0.0
    %677 = vmatpush1.xpose.msra.mxu0 0.0
    %678 = vmatprep.subr.mxu0 0.0
    %679 = vmatpush1.xpose.msra.mxu0 0.0
    %680 = vmatprep.subr.mxu0 0.0
    %681 = vmatpush1.xpose.msra.mxu0 0.0
    %682 = vmatprep.subr.mxu0 0.0
    %683 = vmatpush1.xpose.msra.mxu0 0.0
    %684 = vmatprep.subr.mxu0 0.0
    %685 = vmatpush1.xpose.msra.mxu0 0.0
    %686 = vmatprep.subr.mxu0 0.0
    %687 = vmatpush1.xpose.msra.mxu0 0.0
    %688 = vmatprep.subr.mxu0 0.0
    %689 = vmatpush1.xpose.msra.mxu0 0.0
    %690 = vmatprep.subr.mxu0 0.0
    %691 = vmatpush1.xpose.msra.mxu0 0.0
    %692 = vmatprep.subr.mxu0 0.0
    %693 = vmatpush1.xpose.msra.mxu0 0.0
    %694 = vmatprep.subr.mxu0 0.0
    %695 = vmatpush1.xpose.msra.mxu0 0.0
    %696 = vmatprep.subr.mxu0 0.0
    %697 = vmatpush1.xpose.msra.mxu0 0.0
    %698 = vmatprep.subr.mxu0 0.0
    %699 = vmatpush1.xpose.msra.mxu0 0.0
    %700 = vmatprep.subr.mxu0 0.0
    %701 = vmatpush1.xpose.msra.mxu0 0.0
    %702 = vmatprep.subr.mxu0 0.0
    %703 = vmatpush1.xpose.msra.mxu0 0.0
    %704 = vmatprep.subr.mxu0 0.0
    %705 = vmatpush1.xpose.msra.mxu0 0.0
    %706 = vmatprep.subr.mxu0 0.0
    %707 = vmatpush1.xpose.msra.mxu0 0.0
    %708 = vmatprep.subr.mxu0 0.0
    %709 = vmatpush1.xpose.msra.mxu0 0.0
    %710 = vmatprep.subr.mxu0 0.0
    %711 = vmatpush1.xpose.msra.mxu0 0.0
    %712 = vmatprep.subr.mxu0 0.0
    %713 = vmatpush1.xpose.msra.mxu0 0.0
    %714 = vmatprep.mubr.f32.mxu0 0.0
    %715 = vmatmul.mubr.f32.gmra.mrb[0].mxu0 %v646
    %v716 = vpop.f32.mrb[0].mxu0
    %v717 = vadd.f32 0.0, %v716
    %v718 = vpop.f32.mrb[0].mxu0
    %719 = vdwg.mxu0
    %720 = vrot.lane.b32.xlu0 %v142, 120
    %v721 = vpop.permute.xlu0 %720
    %722 = vrot.lane.b32.xlu0 %v227, 120
    %v723 = vpop.permute.xlu0 %722
    %v724 = vsel %vm315, %v721, 0
    %v726 = vsel %vm315, %v723, 0
    %728 = vmatprep.subr.mxu0 0.0
    %729 = vmatpush1.xpose.msra.mxu0 %v726
    %730 = vmatprep.subr.mxu0 0.0
    %731 = vmatpush1.xpose.msra.mxu0 0.0
    %732 = vmatprep.subr.mxu0 0.0
    %733 = vmatpush1.xpose.msra.mxu0 0.0
    %734 = vmatprep.subr.mxu0 0.0
    %735 = vmatpush1.xpose.msra.mxu0 0.0
    %736 = vmatprep.subr.mxu0 0.0
    %737 = vmatpush1.xpose.msra.mxu0 0.0
    %738 = vmatprep.subr.mxu0 0.0
    %739 = vmatpush1.xpose.msra.mxu0 0.0
    %740 = vmatprep.subr.mxu0 0.0
    %741 = vmatpush1.xpose.msra.mxu0 0.0
    %742 = vmatprep.subr.mxu0 0.0
    %743 = vmatpush1.xpose.msra.mxu0 0.0
    %744 = vmatprep.subr.mxu0 0.0
    %745 = vmatpush1.xpose.msra.mxu0 0.0
    %746 = vmatprep.subr.mxu0 0.0
    %747 = vmatpush1.xpose.msra.mxu0 0.0
    %748 = vmatprep.subr.mxu0 0.0
    %749 = vmatpush1.xpose.msra.mxu0 0.0
    %750 = vmatprep.subr.mxu0 0.0
    %751 = vmatpush1.xpose.msra.mxu0 0.0
    %752 = vmatprep.subr.mxu0 0.0
    %753 = vmatpush1.xpose.msra.mxu0 0.0
    %754 = vmatprep.subr.mxu0 0.0
    %755 = vmatpush1.xpose.msra.mxu0 0.0
    %756 = vmatprep.subr.mxu0 0.0
    %757 = vmatpush1.xpose.msra.mxu0 0.0
    %758 = vmatprep.subr.mxu0 0.0
    %759 = vmatpush1.xpose.msra.mxu0 0.0
    %760 = vmatprep.subr.mxu0 0.0
    %761 = vmatpush1.xpose.msra.mxu0 0.0
    %762 = vmatprep.subr.mxu0 0.0
    %763 = vmatpush1.xpose.msra.mxu0 0.0
    %764 = vmatprep.subr.mxu0 0.0
    %765 = vmatpush1.xpose.msra.mxu0 0.0
    %766 = vmatprep.subr.mxu0 0.0
    %767 = vmatpush1.xpose.msra.mxu0 0.0
    %768 = vmatprep.subr.mxu0 0.0
    %769 = vmatpush1.xpose.msra.mxu0 0.0
    %770 = vmatprep.subr.mxu0 0.0
    %771 = vmatpush1.xpose.msra.mxu0 0.0
    %772 = vmatprep.subr.mxu0 0.0
    %773 = vmatpush1.xpose.msra.mxu0 0.0
    %774 = vmatprep.subr.mxu0 0.0
    %775 = vmatpush1.xpose.msra.mxu0 0.0
    %776 = vmatprep.subr.mxu0 0.0
    %777 = vmatpush1.xpose.msra.mxu0 0.0
    %778 = vmatprep.subr.mxu0 0.0
    %779 = vmatpush1.xpose.msra.mxu0 0.0
    %780 = vmatprep.subr.mxu0 0.0
    %781 = vmatpush1.xpose.msra.mxu0 0.0
    %782 = vmatprep.subr.mxu0 0.0
    %783 = vmatpush1.xpose.msra.mxu0 0.0
    %784 = vmatprep.subr.mxu0 0.0
    %785 = vmatpush1.xpose.msra.mxu0 0.0
    %786 = vmatprep.subr.mxu0 0.0
    %787 = vmatpush1.xpose.msra.mxu0 0.0
    %788 = vmatprep.subr.mxu0 0.0
    %789 = vmatpush1.xpose.msra.mxu0 0.0
    %790 = vmatprep.subr.mxu0 0.0
    %791 = vmatpush1.xpose.msra.mxu0 0.0
    %792 = vmatprep.mubr.f32.mxu0 0.0
    %793 = vmatmul.mubr.f32.gmra.mrb[0].mxu0 %v724
    %v794 = vpop.f32.mrb[0].mxu0
    %v795 = vadd.f32 0.0, %v794
    %v796 = vpop.f32.mrb[0].mxu0
    %797 = vdwg.mxu0
    %v798 = vsel %vm315, %v717, -inf
    %799 = vmax.xlane.f32.xlu0 %v798
    %v800 = vpop.xlane.xlu0 %799
    %v801 = vsel %vm315, %v795, -inf
    %802 = vmax.xlane.f32.xlu0 %v801
    %v803 = vpop.xlane.xlu0 %802
    %v804 = vsub.f32 %v717, %v800
    %v805 = vsub.f32 %v795, %v803
    %v806 = vmul.f32 %v804, 1.442695
    %v807 = vpow.pop %v806
    %v808 = vmul.f32 %v805, 1.442695
    %v809 = vpow.pop %v808
    %v810 = vsel %vm315, %v807, 0.0
    %811 = vadd.xlane.f32.xlu0 %v810
    %v812 = vpop.xlane.xlu0 %811
    %v813 = vsel %vm315, %v809, 0.0
    %814 = vadd.xlane.f32.xlu0 %v813
    %v815 = vpop.xlane.xlu0 %814
    %v816 = vrcp.pop %v812
    %v817 = vrcp.pop %v815
    %v818 = vmul.f32 %v812, %v816
    %v819 = vmul.f32 %v815, %v817
    %v820 = vsub.f32 2.0, %v818
    %v821 = vsub.f32 2.0, %v819
    %v822 = vmul.f32 %v816, %v820
    %v823 = vmul.f32 %v817, %v821
    %v824 = vmul.f32 %v807, %v822
    %v825 = vmul.f32 %v809, %v823
    %827 = vrot.lane.b32.xlu0 %v307, 120
    %v828 = vpop.permute.xlu0 %827
    %v831 = vsel %vm315, %v824, 0
    %833 = vmatprep.subr.mxu0 0.0
    %834 = vmatpush1.msra.mxu0 %v828
    %835 = vmatprep.subr.mxu0 0.0
    %836 = vmatpush1.msra.mxu0 0.0
    %837 = vmatprep.subr.mxu0 0.0
    %838 = vmatpush1.msra.mxu0 0.0
    %839 = vmatprep.subr.mxu0 0.0
    %840 = vmatpush1.msra.mxu0 0.0
    %841 = vmatprep.subr.mxu0 0.0
    %842 = vmatpush1.msra.mxu0 0.0
    %843 = vmatprep.subr.mxu0 0.0
    %844 = vmatpush1.msra.mxu0 0.0
    %845 = vmatprep.subr.mxu0 0.0
    %846 = vmatpush1.msra.mxu0 0.0
    %847 = vmatprep.subr.mxu0 0.0
    %848 = vmatpush1.msra.mxu0 0.0
    %849 = vmatprep.subr.mxu0 0.0
    %850 = vmatpush1.msra.mxu0 0.0
    %851 = vmatprep.subr.mxu0 0.0
    %852 = vmatpush1.msra.mxu0 0.0
    %853 = vmatprep.subr.mxu0 0.0
    %854 = vmatpush1.msra.mxu0 0.0
    %855 = vmatprep.subr.mxu0 0.0
    %856 = vmatpush1.msra.mxu0 0.0
    %857 = vmatprep.subr.mxu0 0.0
    %858 = vmatpush1.msra.mxu0 0.0
    %859 = vmatprep.subr.mxu0 0.0
    %860 = vmatpush1.msra.mxu0 0.0
    %861 = vmatprep.subr.mxu0 0.0
    %862 = vmatpush1.msra.mxu0 0.0
    %863 = vmatprep.subr.mxu0 0.0
    %864 = vmatpush1.msra.mxu0 0.0
    %865 = vmatprep.subr.mxu0 0.0
    %866 = vmatpush1.msra.mxu0 0.0
    %867 = vmatprep.subr.mxu0 0.0
    %868 = vmatpush1.msra.mxu0 0.0
    %869 = vmatprep.subr.mxu0 0.0
    %870 = vmatpush1.msra.mxu0 0.0
    %871 = vmatprep.subr.mxu0 0.0
    %872 = vmatpush1.msra.mxu0 0.0
    %873 = vmatprep.subr.mxu0 0.0
    %874 = vmatpush1.msra.mxu0 0.0
    %875 = vmatprep.subr.mxu0 0.0
    %876 = vmatpush1.msra.mxu0 0.0
    %877 = vmatprep.subr.mxu0 0.0
    %878 = vmatpush1.msra.mxu0 0.0
    %879 = vmatprep.subr.mxu0 0.0
    %880 = vmatpush1.msra.mxu0 0.0
    %881 = vmatprep.subr.mxu0 0.0
    %882 = vmatpush1.msra.mxu0 0.0
    %883 = vmatprep.subr.mxu0 0.0
    %884 = vmatpush1.msra.mxu0 0.0
    %885 = vmatprep.subr.mxu0 0.0
    %886 = vmatpush1.msra.mxu0 0.0
    %887 = vmatprep.subr.mxu0 0.0
    %888 = vmatpush1.msra.mxu0 0.0
    %889 = vmatprep.subr.mxu0 0.0
    %890 = vmatpush1.msra.mxu0 0.0
    %891 = vmatprep.subr.mxu0 0.0
    %892 = vmatpush1.msra.mxu0 0.0
    %893 = vmatprep.subr.mxu0 0.0
    %894 = vmatpush1.msra.mxu0 0.0
    %895 = vmatprep.subr.mxu0 0.0
    %896 = vmatpush1.msra.mxu0 0.0
    %897 = vmatprep.mubr.f32.mxu0 0.0
    %898 = vmatmul.mubr.f32.gmra.mrb[0].mxu0 %v831
    %v899 = vpop.f32.mrb[0].mxu0
    %v900 = vadd.f32 0.0, %v899
    %v901 = vpop.f32.mrb[0].mxu0
    %902 = vdwg.mxu0
    %904 = vrot.lane.b32.xlu0 %v312, 120
    %v905 = vpop.permute.xlu0 %904
    %v908 = vsel %vm315, %v825, 0
    %910 = vmatprep.subr.mxu0 0.0
    %911 = vmatpush1.msra.mxu0 %v905
    %912 = vmatprep.subr.mxu0 0.0
    %913 = vmatpush1.msra.mxu0 0.0
    %914 = vmatprep.subr.mxu0 0.0
    %915 = vmatpush1.msra.mxu0 0.0
    %916 = vmatprep.subr.mxu0 0.0
    %917 = vmatpush1.msra.mxu0 0.0
    %918 = vmatprep.subr.mxu0 0.0
    %919 = vmatpush1.msra.mxu0 0.0
    %920 = vmatprep.subr.mxu0 0.0
    %921 = vmatpush1.msra.mxu0 0.0
    %922 = vmatprep.subr.mxu0 0.0
    %923 = vmatpush1.msra.mxu0 0.0
    %924 = vmatprep.subr.mxu0 0.0
    %925 = vmatpush1.msra.mxu0 0.0
    %926 = vmatprep.subr.mxu0 0.0
    %927 = vmatpush1.msra.mxu0 0.0
    %928 = vmatprep.subr.mxu0 0.0
    %929 = vmatpush1.msra.mxu0 0.0
    %930 = vmatprep.subr.mxu0 0.0
    %931 = vmatpush1.msra.mxu0 0.0
    %932 = vmatprep.subr.mxu0 0.0
    %933 = vmatpush1.msra.mxu0 0.0
    %934 = vmatprep.subr.mxu0 0.0
    %935 = vmatpush1.msra.mxu0 0.0
    %936 = vmatprep.subr.mxu0 0.0
    %937 = vmatpush1.msra.mxu0 0.0
    %938 = vmatprep.subr.mxu0 0.0
    %939 = vmatpush1.msra.mxu0 0.0
    %940 = vmatprep.subr.mxu0 0.0
    %941 = vmatpush1.msra.mxu0 0.0
    %942 = vmatprep.subr.mxu0 0.0
    %943 = vmatpush1.msra.mxu0 0.0
    %944 = vmatprep.subr.mxu0 0.0
    %945 = vmatpush1.msra.mxu0 0.0
    %946 = vmatprep.subr.mxu0 0.0
    %947 = vmatpush1.msra.mxu0 0.0
    %948 = vmatprep.subr.mxu0 0.0
    %949 = vmatpush1.msra.mxu0 0.0
    %950 = vmatprep.subr.mxu0 0.0
    %951 = vmatpush1.msra.mxu0 0.0
    %952 = vmatprep.subr.mxu0 0.0
    %953 = vmatpush1.msra.mxu0 0.0
    %954 = vmatprep.subr.mxu0 0.0
    %955 = vmatpush1.msra.mxu0 0.0
    %956 = vmatprep.subr.mxu0 0.0
    %957 = vmatpush1.msra.mxu0 0.0
    %958 = vmatprep.subr.mxu0 0.0
    %959 = vmatpush1.msra.mxu0 0.0
    %960 = vmatprep.subr.mxu0 0.0
    %961 = vmatpush1.msra.mxu0 0.0
    %962 = vmatprep.subr.mxu0 0.0
    %963 = vmatpush1.msra.mxu0 0.0
    %964 = vmatprep.subr.mxu0 0.0
    %965 = vmatpush1.msra.mxu0 0.0
    %966 = vmatprep.subr.mxu0 0.0
    %967 = vmatpush1.msra.mxu0 0.0
    %968 = vmatprep.subr.mxu0 0.0
    %969 = vmatpush1.msra.mxu0 0.0
    %970 = vmatprep.subr.mxu0 0.0
    %971 = vmatpush1.msra.mxu0 0.0
    %972 = vmatprep.subr.mxu0 0.0
    %973 = vmatpush1.msra.mxu0 0.0
    %974 = vmatprep.mubr.f32.mxu0 0.0
    %975 = vmatmul.mubr.f32.gmra.mrb[0].mxu0 %v908
    %v976 = vpop.f32.mrb[0].mxu0
    %v977 = vadd.f32 0.0, %v976
    %v978 = vpop.f32.mrb[0].mxu0
    %979 = vdwg.mxu0
    %980 = vrot.lane.b32.xlu0 %v137, 112
    %v981 = vpop.permute.xlu0 %980
    %982 = vrot.lane.b32.xlu0 %v222, 112
    %v983 = vpop.permute.xlu0 %982
    %v984 = vsel %vm315, %v981, 0
    %v986 = vsel %vm315, %v983, 0
    %988 = vmatprep.subr.mxu0 0.0
    %989 = vmatpush1.xpose.msra.mxu0 %v986
    %990 = vmatprep.subr.mxu0 0.0
    %991 = vmatpush1.xpose.msra.mxu0 0.0
    %992 = vmatprep.subr.mxu0 0.0
    %993 = vmatpush1.xpose.msra.mxu0 0.0
    %994 = vmatprep.subr.mxu0 0.0
    %995 = vmatpush1.xpose.msra.mxu0 0.0
    %996 = vmatprep.subr.mxu0 0.0
    %997 = vmatpush1.xpose.msra.mxu0 0.0
    %998 = vmatprep.subr.mxu0 0.0
    %999 = vmatpush1.xpose.msra.mxu0 0.0
    %1000 = vmatprep.subr.mxu0 0.0
    %1001 = vmatpush1.xpose.msra.mxu0 0.0
    %1002 = vmatprep.subr.mxu0 0.0
    %1003 = vmatpush1.xpose.msra.mxu0 0.0
    %1004 = vmatprep.subr.mxu0 0.0
    %1005 = vmatpush1.xpose.msra.mxu0 0.0
    %1006 = vmatprep.subr.mxu0 0.0
    %1007 = vmatpush1.xpose.msra.mxu0 0.0
    %1008 = vmatprep.subr.mxu0 0.0
    %1009 = vmatpush1.xpose.msra.mxu0 0.0
    %1010 = vmatprep.subr.mxu0 0.0
    %1011 = vmatpush1.xpose.msra.mxu0 0.0
    %1012 = vmatprep.subr.mxu0 0.0
    %1013 = vmatpush1.xpose.msra.mxu0 0.0
    %1014 = vmatprep.subr.mxu0 0.0
    %1015 = vmatpush1.xpose.msra.mxu0 0.0
    %1016 = vmatprep.subr.mxu0 0.0
    %1017 = vmatpush1.xpose.msra.mxu0 0.0
    %1018 = vmatprep.subr.mxu0 0.0
    %1019 = vmatpush1.xpose.msra.mxu0 0.0
    %1020 = vmatprep.subr.mxu0 0.0
    %1021 = vmatpush1.xpose.msra.mxu0 0.0
    %1022 = vmatprep.subr.mxu0 0.0
    %1023 = vmatpush1.xpose.msra.mxu0 0.0
    %1024 = vmatprep.subr.mxu0 0.0
    %1025 = vmatpush1.xpose.msra.mxu0 0.0
    %1026 = vmatprep.subr.mxu0 0.0
    %1027 = vmatpush1.xpose.msra.mxu0 0.0
    %1028 = vmatprep.subr.mxu0 0.0
    %1029 = vmatpush1.xpose.msra.mxu0 0.0
    %1030 = vmatprep.subr.mxu0 0.0
    %1031 = vmatpush1.xpose.msra.mxu0 0.0
    %1032 = vmatprep.subr.mxu0 0.0
    %1033 = vmatpush1.xpose.msra.mxu0 0.0
    %1034 = vmatprep.subr.mxu0 0.0
    %1035 = vmatpush1.xpose.msra.mxu0 0.0
    %1036 = vmatprep.subr.mxu0 0.0
    %1037 = vmatpush1.xpose.msra.mxu0 0.0
    %1038 = vmatprep.subr.mxu0 0.0
    %1039 = vmatpush1.xpose.msra.mxu0 0.0
    %1040 = vmatprep.subr.mxu0 0.0
    %1041 = vmatpush1.xpose.msra.mxu0 0.0
    %1042 = vmatprep.subr.mxu0 0.0
    %1043 = vmatpush1.xpose.msra.mxu0 0.0
    %1044 = vmatprep.subr.mxu0 0.0
    %1045 = vmatpush1.xpose.msra.mxu0 0.0
    %1046 = vmatprep.subr.mxu0 0.0
    %1047 = vmatpush1.xpose.msra.mxu0 0.0
    %1048 = vmatprep.subr.mxu0 0.0
    %1049 = vmatpush1.xpose.msra.mxu0 0.0
    %1050 = vmatprep.subr.mxu0 0.0
    %1051 = vmatpush1.xpose.msra.mxu0 0.0
    %1052 = vmatprep.mubr.f32.mxu0 0.0
    %1053 = vmatmul.mubr.f32.gmra.mrb[0].mxu0 %v984
    %v1054 = vpop.f32.mrb[0].mxu0
    %v1055 = vadd.f32 0.0, %v1054
    %v1056 = vpop.f32.mrb[0].mxu0
    %1057 = vdwg.mxu0
    %1058 = vrot.lane.b32.xlu0 %v142, 112
    %v1059 = vpop.permute.xlu0 %1058
    %1060 = vrot.lane.b32.xlu0 %v227, 112
    %v1061 = vpop.permute.xlu0 %1060
    %v1062 = vsel %vm315, %v1059, 0
    %v1064 = vsel %vm315, %v1061, 0
    %1066 = vmatprep.subr.mxu0 0.0
    %1067 = vmatpush1.xpose.msra.mxu0 %v1064
    %1068 = vmatprep.subr.mxu0 0.0
    %1069 = vmatpush1.xpose.msra.mxu0 0.0
    %1070 = vmatprep.subr.mxu0 0.0
    %1071 = vmatpush1.xpose.msra.mxu0 0.0
    %1072 = vmatprep.subr.mxu0 0.0
    %1073 = vmatpush1.xpose.msra.mxu0 0.0
    %1074 = vmatprep.subr.mxu0 0.0
    %1075 = vmatpush1.xpose.msra.mxu0 0.0
    %1076 = vmatprep.subr.mxu0 0.0
    %1077 = vmatpush1.xpose.msra.mxu0 0.0
    %1078 = vmatprep.subr.mxu0 0.0
    %1079 = vmatpush1.xpose.msra.mxu0 0.0
    %1080 = vmatprep.subr.mxu0 0.0
    %1081 = vmatpush1.xpose.msra.mxu0 0.0
    %1082 = vmatprep.subr.mxu0 0.0
    %1083 = vmatpush1.xpose.msra.mxu0 0.0
    %1084 = vmatprep.subr.mxu0 0.0
    %1085 = vmatpush1.xpose.msra.mxu0 0.0
    %1086 = vmatprep.subr.mxu0 0.0
    %1087 = vmatpush1.xpose.msra.mxu0 0.0
    %1088 = vmatprep.subr.mxu0 0.0
    %1089 = vmatpush1.xpose.msra.mxu0 0.0
    %1090 = vmatprep.subr.mxu0 0.0
    %1091 = vmatpush1.xpose.msra.mxu0 0.0
    %1092 = vmatprep.subr.mxu0 0.0
    %1093 = vmatpush1.xpose.msra.mxu0 0.0
    %1094 = vmatprep.subr.mxu0 0.0
    %1095 = vmatpush1.xpose.msra.mxu0 0.0
    %1096 = vmatprep.subr.mxu0 0.0
    %1097 = vmatpush1.xpose.msra.mxu0 0.0
    %1098 = vmatprep.subr.mxu0 0.0
    %1099 = vmatpush1.xpose.msra.mxu0 0.0
    %1100 = vmatprep.subr.mxu0 0.0
    %1101 = vmatpush1.xpose.msra.mxu0 0.0
    %1102 = vmatprep.subr.mxu0 0.0
    %1103 = vmatpush1.xpose.msra.mxu0 0.0
    %1104 = vmatprep.subr.mxu0 0.0
    %1105 = vmatpush1.xpose.msra.mxu0 0.0
    %1106 = vmatprep.subr.mxu0 0.0
    %1107 = vmatpush1.xpose.msra.mxu0 0.0
    %1108 = vmatprep.subr.mxu0 0.0
    %1109 = vmatpush1.xpose.msra.mxu0 0.0
    %1110 = vmatprep.subr.mxu0 0.0
    %1111 = vmatpush1.xpose.msra.mxu0 0.0
    %1112 = vmatprep.subr.mxu0 0.0
    %1113 = vmatpush1.xpose.msra.mxu0 0.0
    %1114 = vmatprep.subr.mxu0 0.0
    %1115 = vmatpush1.xpose.msra.mxu0 0.0
    %1116 = vmatprep.subr.mxu0 0.0
    %1117 = vmatpush1.xpose.msra.mxu0 0.0
    %1118 = vmatprep.subr.mxu0 0.0
    %1119 = vmatpush1.xpose.msra.mxu0 0.0
    %1120 = vmatprep.subr.mxu0 0.0
    %1121 = vmatpush1.xpose.msra.mxu0 0.0
    %1122 = vmatprep.subr.mxu0 0.0
    %1123 = vmatpush1.xpose.msra.mxu0 0.0
    %1124 = vmatprep.subr.mxu0 0.0
    %1125 = vmatpush1.xpose.msra.mxu0 0.0
    %1126 = vmatprep.subr.mxu0 0.0
    %1127 = vmatpush1.xpose.msra.mxu0 0.0
    %1128 = vmatprep.subr.mxu0 0.0
    %1129 = vmatpush1.xpose.msra.mxu0 0.0
    %1130 = vmatprep.mubr.f32.mxu0 0.0
    %1131 = vmatmul.mubr.f32.gmra.mrb[0].mxu0 %v1062
    %v1132 = vpop.f32.mrb[0].mxu0
    %v1133 = vadd.f32 0.0, %v1132
    %v1134 = vpop.f32.mrb[0].mxu0
    %1135 = vdwg.mxu0
    %v1136 = vsel %vm315, %v1055, -inf
    %1137 = vmax.xlane.f32.xlu0 %v1136
    %v1138 = vpop.xlane.xlu0 %1137
    %v1139 = vsel %vm315, %v1133, -inf
    %1140 = vmax.xlane.f32.xlu0 %v1139
    %v1141 = vpop.xlane.xlu0 %1140
    %v1142 = vsub.f32 %v1055, %v1138
    %v1143 = vsub.f32 %v1133, %v1141
    %v1144 = vmul.f32 %v1142, 1.442695
    %v1145 = vpow.pop %v1144
    %v1146 = vmul.f32 %v1143, 1.442695
    %v1147 = vpow.pop %v1146
    %v1148 = vsel %vm315, %v1145, 0.0
    %1149 = vadd.xlane.f32.xlu0 %v1148
    %v1150 = vpop.xlane.xlu0 %1149
    %v1151 = vsel %vm315, %v1147, 0.0
    %1152 = vadd.xlane.f32.xlu0 %v1151
    %v1153 = vpop.xlane.xlu0 %1152
    %v1154 = vrcp.pop %v1150
    %v1155 = vrcp.pop %v1153
    %v1156 = vmul.f32 %v1150, %v1154
    %v1157 = vmul.f32 %v1153, %v1155
    %v1158 = vsub.f32 2.0, %v1156
    %v1159 = vsub.f32 2.0, %v1157
    %v1160 = vmul.f32 %v1154, %v1158
    %v1161 = vmul.f32 %v1155, %v1159
    %v1162 = vmul.f32 %v1145, %v1160
    %v1163 = vmul.f32 %v1147, %v1161
    %1164 = vrot.lane.b32.xlu0 %v307, 112
    %v1165 = vpop.permute.xlu0 %1164
    %v1168 = vsel %vm315, %v1162, 0
    %1170 = vmatprep.subr.mxu0 0.0
    %1171 = vmatpush1.msra.mxu0 %v1165
    %1172 = vmatprep.subr.mxu0 0.0
    %1173 = vmatpush1.msra.mxu0 0.0
    %1174 = vmatprep.subr.mxu0 0.0
    %1175 = vmatpush1.msra.mxu0 0.0
    %1176 = vmatprep.subr.mxu0 0.0
    %1177 = vmatpush1.msra.mxu0 0.0
    %1178 = vmatprep.subr.mxu0 0.0
    %1179 = vmatpush1.msra.mxu0 0.0
    %1180 = vmatprep.subr.mxu0 0.0
    %1181 = vmatpush1.msra.mxu0 0.0
    %1182 = vmatprep.subr.mxu0 0.0
    %1183 = vmatpush1.msra.mxu0 0.0
    %1184 = vmatprep.subr.mxu0 0.0
    %1185 = vmatpush1.msra.mxu0 0.0
    %1186 = vmatprep.subr.mxu0 0.0
    %1187 = vmatpush1.msra.mxu0 0.0
    %1188 = vmatprep.subr.mxu0 0.0
    %1189 = vmatpush1.msra.mxu0 0.0
    %1190 = vmatprep.subr.mxu0 0.0
    %1191 = vmatpush1.msra.mxu0 0.0
    %1192 = vmatprep.subr.mxu0 0.0
    %1193 = vmatpush1.msra.mxu0 0.0
    %1194 = vmatprep.subr.mxu0 0.0
    %1195 = vmatpush1.msra.mxu0 0.0
    %1196 = vmatprep.subr.mxu0 0.0
    %1197 = vmatpush1.msra.mxu0 0.0
    %1198 = vmatprep.subr.mxu0 0.0
    %1199 = vmatpush1.msra.mxu0 0.0
    %1200 = vmatprep.subr.mxu0 0.0
    %1201 = vmatpush1.msra.mxu0 0.0
    %1202 = vmatprep.subr.mxu0 0.0
    %1203 = vmatpush1.msra.mxu0 0.0
    %1204 = vmatprep.subr.mxu0 0.0
    %1205 = vmatpush1.msra.mxu0 0.0
    %1206 = vmatprep.subr.mxu0 0.0
    %1207 = vmatpush1.msra.mxu0 0.0
    %1208 = vmatprep.subr.mxu0 0.0
    %1209 = vmatpush1.msra.mxu0 0.0
    %1210 = vmatprep.subr.mxu0 0.0
    %1211 = vmatpush1.msra.mxu0 0.0
    %1212 = vmatprep.subr.mxu0 0.0
    %1213 = vmatpush1.msra.mxu0 0.0
    %1214 = vmatprep.subr.mxu0 0.0
    %1215 = vmatpush1.msra.mxu0 0.0
    %1216 = vmatprep.subr.mxu0 0.0
    %1217 = vmatpush1.msra.mxu0 0.0
    %1218 = vmatprep.subr.mxu0 0.0
    %1219 = vmatpush1.msra.mxu0 0.0
    %1220 = vmatprep.subr.mxu0 0.0
    %1221 = vmatpush1.msra.mxu0 0.0
    %1222 = vmatprep.subr.mxu0 0.0
    %1223 = vmatpush1.msra.mxu0 0.0
    %1224 = vmatprep.subr.mxu0 0.0
    %1225 = vmatpush1.msra.mxu0 0.0
    %1226 = vmatprep.subr.mxu0 0.0
    %1227 = vmatpush1.msra.mxu0 0.0
    %1228 = vmatprep.subr.mxu0 0.0
    %1229 = vmatpush1.msra.mxu0 0.0
    %1230 = vmatprep.subr.mxu0 0.0
    %1231 = vmatpush1.msra.mxu0 0.0
    %1232 = vmatprep.subr.mxu0 0.0
    %1233 = vmatpush1.msra.mxu0 0.0
    %1234 = vmatprep.mubr.f32.mxu0 0.0
    %1235 = vmatmul.mubr.f32.gmra.mrb[0].mxu0 %v1168
    %v1236 = vpop.f32.mrb[0].mxu0
    %v1237 = vadd.f32 0.0, %v1236
    %v1238 = vpop.f32.mrb[0].mxu0
    %1239 = vdwg.mxu0
    %1240 = vrot.lane.b32.xlu0 %v312, 112
    %v1241 = vpop.permute.xlu0 %1240
    %v1244 = vsel %vm315, %v1163, 0
    %1246 = vmatprep.subr.mxu0 0.0
    %1247 = vmatpush1.msra.mxu0 %v1241
    %1248 = vmatprep.subr.mxu0 0.0
    %1249 = vmatpush1.msra.mxu0 0.0
    %1250 = vmatprep.subr.mxu0 0.0
    %1251 = vmatpush1.msra.mxu0 0.0
    %1252 = vmatprep.subr.mxu0 0.0
    %1253 = vmatpush1.msra.mxu0 0.0
    %1254 = vmatprep.subr.mxu0 0.0
    %1255 = vmatpush1.msra.mxu0 0.0
    %1256 = vmatprep.subr.mxu0 0.0
    %1257 = vmatpush1.msra.mxu0 0.0
    %1258 = vmatprep.subr.mxu0 0.0
    %1259 = vmatpush1.msra.mxu0 0.0
    %1260 = vmatprep.subr.mxu0 0.0
    %1261 = vmatpush1.msra.mxu0 0.0
    %1262 = vmatprep.subr.mxu0 0.0
    %1263 = vmatpush1.msra.mxu0 0.0
    %1264 = vmatprep.subr.mxu0 0.0
    %1265 = vmatpush1.msra.mxu0 0.0
    %1266 = vmatprep.subr.mxu0 0.0
    %1267 = vmatpush1.msra.mxu0 0.0
    %1268 = vmatprep.subr.mxu0 0.0
    %1269 = vmatpush1.msra.mxu0 0.0
    %1270 = vmatprep.subr.mxu0 0.0
    %1271 = vmatpush1.msra.mxu0 0.0
    %1272 = vmatprep.subr.mxu0 0.0
    %1273 = vmatpush1.msra.mxu0 0.0
    %1274 = vmatprep.subr.mxu0 0.0
    %1275 = vmatpush1.msra.mxu0 0.0
    %1276 = vmatprep.subr.mxu0 0.0
    %1277 = vmatpush1.msra.mxu0 0.0
    %1278 = vmatprep.subr.mxu0 0.0
    %1279 = vmatpush1.msra.mxu0 0.0
    %1280 = vmatprep.subr.mxu0 0.0
    %1281 = vmatpush1.msra.mxu0 0.0
    %1282 = vmatprep.subr.mxu0 0.0
    %1283 = vmatpush1.msra.mxu0 0.0
    %1284 = vmatprep.subr.mxu0 0.0
    %1285 = vmatpush1.msra.mxu0 0.0
    %1286 = vmatprep.subr.mxu0 0.0
    %1287 = vmatpush1.msra.mxu0 0.0
    %1288 = vmatprep.subr.mxu0 0.0
    %1289 = vmatpush1.msra.mxu0 0.0
    %1290 = vmatprep.subr.mxu0 0.0
    %1291 = vmatpush1.msra.mxu0 0.0
    %1292 = vmatprep.subr.mxu0 0.0
    %1293 = vmatpush1.msra.mxu0 0.0
    %1294 = vmatprep.subr.mxu0 0.0
    %1295 = vmatpush1.msra.mxu0 0.0
    %1296 = vmatprep.subr.mxu0 0.0
    %1297 = vmatpush1.msra.mxu0 0.0
    %1298 = vmatprep.subr.mxu0 0.0
    %1299 = vmatpush1.msra.mxu0 0.0
    %1300 = vmatprep.subr.mxu0 0.0
    %1301 = vmatpush1.msra.mxu0 0.0
    %1302 = vmatprep.subr.mxu0 0.0
    %1303 = vmatpush1.msra.mxu0 0.0
    %1304 = vmatprep.subr.mxu0 0.0
    %1305 = vmatpush1.msra.mxu0 0.0
    %1306 = vmatprep.subr.mxu0 0.0
    %1307 = vmatpush1.msra.mxu0 0.0
    %1308 = vmatprep.subr.mxu0 0.0
    %1309 = vmatpush1.msra.mxu0 0.0
    %1310 = vmatprep.mubr.f32.mxu0 0.0
    %1311 = vmatmul.mubr.f32.gmra.mrb[0].mxu0 %v1244
    %v1312 = vpop.f32.mrb[0].mxu0
    %v1313 = vadd.f32 0.0, %v1312
    %v1314 = vpop.f32.mrb[0].mxu0
    %1315 = vdwg.mxu0
    %1316 = vrot.lane.b32.xlu0 %v137, 104
    %v1317 = vpop.permute.xlu0 %1316
    %1318 = vrot.lane.b32.xlu0 %v222, 104
    %v1319 = vpop.permute.xlu0 %1318
    %v1320 = vsel %vm315, %v1317, 0
    %v1322 = vsel %vm315, %v1319, 0
    %1324 = vmatprep.subr.mxu0 0.0
    %1325 = vmatpush1.xpose.msra.mxu0 %v1322
    %1326 = vmatprep.subr.mxu0 0.0
    %1327 = vmatpush1.xpose.msra.mxu0 0.0
    %1328 = vmatprep.subr.mxu0 0.0
    %1329 = vmatpush1.xpose.msra.mxu0 0.0
    %1330 = vmatprep.subr.mxu0 0.0
    %1331 = vmatpush1.xpose.msra.mxu0 0.0
    %1332 = vmatprep.subr.mxu0 0.0
    %1333 = vmatpush1.xpose.msra.mxu0 0.0
    %1334 = vmatprep.subr.mxu0 0.0
    %1335 = vmatpush1.xpose.msra.mxu0 0.0
    %1336 = vmatprep.subr.mxu0 0.0
    %1337 = vmatpush1.xpose.msra.mxu0 0.0
    %1338 = vmatprep.subr.mxu0 0.0
    %1339 = vmatpush1.xpose.msra.mxu0 0.0
    %1340 = vmatprep.subr.mxu0 0.0
    %1341 = vmatpush1.xpose.msra.mxu0 0.0
    %1342 = vmatprep.subr.mxu0 0.0
    %1343 = vmatpush1.xpose.msra.mxu0 0.0
    %1344 = vmatprep.subr.mxu0 0.0
    %1345 = vmatpush1.xpose.msra.mxu0 0.0
    %1346 = vmatprep.subr.mxu0 0.0
    %1347 = vmatpush1.xpose.msra.mxu0 0.0
    %1348 = vmatprep.subr.mxu0 0.0
    %1349 = vmatpush1.xpose.msra.mxu0 0.0
    %1350 = vmatprep.subr.mxu0 0.0
    %1351 = vmatpush1.xpose.msra.mxu0 0.0
    %1352 = vmatprep.subr.mxu0 0.0
    %1353 = vmatpush1.xpose.msra.mxu0 0.0
    %1354 = vmatprep.subr.mxu0 0.0
    %1355 = vmatpush1.xpose.msra.mxu0 0.0
    %1356 = vmatprep.subr.mxu0 0.0
    %1357 = vmatpush1.xpose.msra.mxu0 0.0
    %1358 = vmatprep.subr.mxu0 0.0
    %1359 = vmatpush1.xpose.msra.mxu0 0.0
    %1360 = vmatprep.subr.mxu0 0.0
    %1361 = vmatpush1.xpose.msra.mxu0 0.0
    %1362 = vmatprep.subr.mxu0 0.0
    %1363 = vmatpush1.xpose.msra.mxu0 0.0
    %1364 = vmatprep.subr.mxu0 0.0
    %1365 = vmatpush1.xpose.msra.mxu0 0.0
    %1366 = vmatprep.subr.mxu0 0.0
    %1367 = vmatpush1.xpose.msra.mxu0 0.0
    %1368 = vmatprep.subr.mxu0 0.0
    %1369 = vmatpush1.xpose.msra.mxu0 0.0
    %1370 = vmatprep.subr.mxu0 0.0
    %1371 = vmatpush1.xpose.msra.mxu0 0.0
    %1372 = vmatprep.subr.mxu0 0.0
    %1373 = vmatpush1.xpose.msra.mxu0 0.0
    %1374 = vmatprep.subr.mxu0 0.0
    %1375 = vmatpush1.xpose.msra.mxu0 0.0
    %1376 = vmatprep.subr.mxu0 0.0
    %1377 = vmatpush1.xpose.msra.mxu0 0.0
    %1378 = vmatprep.subr.mxu0 0.0
    %1379 = vmatpush1.xpose.msra.mxu0 0.0
    %1380 = vmatprep.subr.mxu0 0.0
    %1381 = vmatpush1.xpose.msra.mxu0 0.0
    %1382 = vmatprep.subr.mxu0 0.0
    %1383 = vmatpush1.xpose.msra.mxu0 0.0
    %1384 = vmatprep.subr.mxu0 0.0
    %1385 = vmatpush1.xpose.msra.mxu0 0.0
    %1386 = vmatprep.subr.mxu0 0.0
    %1387 = vmatpush1.xpose.msra.mxu0 0.0
    %1388 = vmatprep.mubr.f32.mxu0 0.0
    %1389 = vmatmul.mubr.f32.gmra.mrb[0].mxu0 %v1320
    %v1390 = vpop.f32.mrb[0].mxu0
    %v1391 = vadd.f32 0.0, %v1390
    %v1392 = vpop.f32.mrb[0].mxu0
    %1393 = vdwg.mxu0
    %1394 = vrot.lane.b32.xlu0 %v142, 104
    %v1395 = vpop.permute.xlu0 %1394
    %1396 = vrot.lane.b32.xlu0 %v227, 104
    %v1397 = vpop.permute.xlu0 %1396
    %v1398 = vsel %vm315, %v1395, 0
    %v1400 = vsel %vm315, %v1397, 0
    %1402 = vmatprep.subr.mxu0 0.0
    %1403 = vmatpush1.xpose.msra.mxu0 %v1400
    %1404 = vmatprep.subr.mxu0 0.0
    %1405 = vmatpush1.xpose.msra.mxu0 0.0
    %1406 = vmatprep.subr.mxu0 0.0
    %1407 = vmatpush1.xpose.msra.mxu0 0.0
    %1408 = vmatprep.subr.mxu0 0.0
    %1409 = vmatpush1.xpose.msra.mxu0 0.0
    %1410 = vmatprep.subr.mxu0 0.0
    %1411 = vmatpush1.xpose.msra.mxu0 0.0
    %1412 = vmatprep.subr.mxu0 0.0
    %1413 = vmatpush1.xpose.msra.mxu0 0.0
    %1414 = vmatprep.subr.mxu0 0.0
    %1415 = vmatpush1.xpose.msra.mxu0 0.0
    %1416 = vmatprep.subr.mxu0 0.0
    %1417 = vmatpush1.xpose.msra.mxu0 0.0
    %1418 = vmatprep.subr.mxu0 0.0
    %1419 = vmatpush1.xpose.msra.mxu0 0.0
    %1420 = vmatprep.subr.mxu0 0.0
    %1421 = vmatpush1.xpose.msra.mxu0 0.0
    %1422 = vmatprep.subr.mxu0 0.0
    %1423 = vmatpush1.xpose.msra.mxu0 0.0
    %1424 = vmatprep.subr.mxu0 0.0
    %1425 = vmatpush1.xpose.msra.mxu0 0.0
    %1426 = vmatprep.subr.mxu0 0.0
    %1427 = vmatpush1.xpose.msra.mxu0 0.0
    %1428 = vmatprep.subr.mxu0 0.0
    %1429 = vmatpush1.xpose.msra.mxu0 0.0
    %1430 = vmatprep.subr.mxu0 0.0
    %1431 = vmatpush1.xpose.msra.mxu0 0.0
    %1432 = vmatprep.subr.mxu0 0.0
    %1433 = vmatpush1.xpose.msra.mxu0 0.0
    %1434 = vmatprep.subr.mxu0 0.0
    %1435 = vmatpush1.xpose.msra.mxu0 0.0
    %1436 = vmatprep.subr.mxu0 0.0
    %1437 = vmatpush1.xpose.msra.mxu0 0.0
    %1438 = vmatprep.subr.mxu0 0.0
    %1439 = vmatpush1.xpose.msra.mxu0 0.0
    %1440 = vmatprep.subr.mxu0 0.0
    %1441 = vmatpush1.xpose.msra.mxu0 0.0
    %1442 = vmatprep.subr.mxu0 0.0
    %1443 = vmatpush1.xpose.msra.mxu0 0.0
    %1444 = vmatprep.subr.mxu0 0.0
    %1445 = vmatpush1.xpose.msra.mxu0 0.0
    %1446 = vmatprep.subr.mxu0 0.0
    %1447 = vmatpush1.xpose.msra.mxu0 0.0
    %1448 = vmatprep.subr.mxu0 0.0
    %1449 = vmatpush1.xpose.msra.mxu0 0.0
    %1450 = vmatprep.subr.mxu0 0.0
    %1451 = vmatpush1.xpose.msra.mxu0 0.0
    %1452 = vmatprep.subr.mxu0 0.0
    %1453 = vmatpush1.xpose.msra.mxu0 0.0
    %1454 = vmatprep.subr.mxu0 0.0
    %1455 = vmatpush1.xpose.msra.mxu0 0.0
    %1456 = vmatprep.subr.mxu0 0.0
    %1457 = vmatpush1.xpose.msra.mxu0 0.0
    %1458 = vmatprep.subr.mxu0 0.0
    %1459 = vmatpush1.xpose.msra.mxu0 0.0
    %1460 = vmatprep.subr.mxu0 0.0
    %1461 = vmatpush1.xpose.msra.mxu0 0.0
    %1462 = vmatprep.subr.mxu0 0.0
    %1463 = vmatpush1.xpose.msra.mxu0 0.0
    %1464 = vmatprep.subr.mxu0 0.0
    %1465 = vmatpush1.xpose.msra.mxu0 0.0
    %1466 = vmatprep.mubr.f32.mxu0 0.0
    %1467 = vmatmul.mubr.f32.gmra.mrb[0].mxu0 %v1398
    %v1468 = vpop.f32.mrb[0].mxu0
    %v1469 = vadd.f32 0.0, %v1468
    %v1470 = vpop.f32.mrb[0].mxu0
    %1471 = vdwg.mxu0
    %v1472 = vsel %vm315, %v1391, -inf
    %1473 = vmax.xlane.f32.xlu0 %v1472
    %v1474 = vpop.xlane.xlu0 %1473
    %v1475 = vsel %vm315, %v1469, -inf
    %1476 = vmax.xlane.f32.xlu0 %v1475
    %v1477 = vpop.xlane.xlu0 %1476
    %v1478 = vsub.f32 %v1391, %v1474
    %v1479 = vsub.f32 %v1469, %v1477
    %v1480 = vmul.f32 %v1478, 1.442695
    %v1481 = vpow.pop %v1480
    %v1482 = vmul.f32 %v1479, 1.442695
    %v1483 = vpow.pop %v1482
    %v1484 = vsel %vm315, %v1481, 0.0
    %1485 = vadd.xlane.f32.xlu0 %v1484
    %v1486 = vpop.xlane.xlu0 %1485
    %v1487 = vsel %vm315, %v1483, 0.0
    %1488 = vadd.xlane.f32.xlu0 %v1487
    %v1489 = vpop.xlane.xlu0 %1488
    %v1490 = vrcp.pop %v1486
    %v1491 = vrcp.pop %v1489
    %v1492 = vmul.f32 %v1486, %v1490
    %v1493 = vmul.f32 %v1489, %v1491
    %v1494 = vsub.f32 2.0, %v1492
    %v1495 = vsub.f32 2.0, %v1493
    %v1496 = vmul.f32 %v1490, %v1494
    %v1497 = vmul.f32 %v1491, %v1495
    %v1498 = vmul.f32 %v1481, %v1496
    %v1499 = vmul.f32 %v1483, %v1497
    %1500 = vrot.lane.b32.xlu0 %v307, 104
    %v1501 = vpop.permute.xlu0 %1500
    %v1504 = vsel %vm315, %v1498, 0
    %1506 = vmatprep.subr.mxu0 0.0
    %1507 = vmatpush1.msra.mxu0 %v1501
    %1508 = vmatprep.subr.mxu0 0.0
    %1509 = vmatpush1.msra.mxu0 0.0
    %1510 = vmatprep.subr.mxu0 0.0
    %1511 = vmatpush1.msra.mxu0 0.0
    %1512 = vmatprep.subr.mxu0 0.0
    %1513 = vmatpush1.msra.mxu0 0.0
    %1514 = vmatprep.subr.mxu0 0.0
    %1515 = vmatpush1.msra.mxu0 0.0
    %1516 = vmatprep.subr.mxu0 0.0
    %1517 = vmatpush1.msra.mxu0 0.0
    %1518 = vmatprep.subr.mxu0 0.0
    %1519 = vmatpush1.msra.mxu0 0.0
    %1520 = vmatprep.subr.mxu0 0.0
    %1521 = vmatpush1.msra.mxu0 0.0
    %1522 = vmatprep.subr.mxu0 0.0
    %1523 = vmatpush1.msra.mxu0 0.0
    %1524 = vmatprep.subr.mxu0 0.0
    %1525 = vmatpush1.msra.mxu0 0.0
    %1526 = vmatprep.subr.mxu0 0.0
    %1527 = vmatpush1.msra.mxu0 0.0
    %1528 = vmatprep.subr.mxu0 0.0
    %1529 = vmatpush1.msra.mxu0 0.0
    %1530 = vmatprep.subr.mxu0 0.0
    %1531 = vmatpush1.msra.mxu0 0.0
    %1532 = vmatprep.subr.mxu0 0.0
    %1533 = vmatpush1.msra.mxu0 0.0
    %1534 = vmatprep.subr.mxu0 0.0
    %1535 = vmatpush1.msra.mxu0 0.0
    %1536 = vmatprep.subr.mxu0 0.0
    %1537 = vmatpush1.msra.mxu0 0.0
    %1538 = vmatprep.subr.mxu0 0.0
    %1539 = vmatpush1.msra.mxu0 0.0
    %1540 = vmatprep.subr.mxu0 0.0
    %1541 = vmatpush1.msra.mxu0 0.0
    %1542 = vmatprep.subr.mxu0 0.0
    %1543 = vmatpush1.msra.mxu0 0.0
    %1544 = vmatprep.subr.mxu0 0.0
    %1545 = vmatpush1.msra.mxu0 0.0
    %1546 = vmatprep.subr.mxu0 0.0
    %1547 = vmatpush1.msra.mxu0 0.0
    %1548 = vmatprep.subr.mxu0 0.0
    %1549 = vmatpush1.msra.mxu0 0.0
    %1550 = vmatprep.subr.mxu0 0.0
    %1551 = vmatpush1.msra.mxu0 0.0
    %1552 = vmatprep.subr.mxu0 0.0
    %1553 = vmatpush1.msra.mxu0 0.0
    %1554 = vmatprep.subr.mxu0 0.0
    %1555 = vmatpush1.msra.mxu0 0.0
    %1556 = vmatprep.subr.mxu0 0.0
    %1557 = vmatpush1.msra.mxu0 0.0
    %1558 = vmatprep.subr.mxu0 0.0
    %1559 = vmatpush1.msra.mxu0 0.0
    %1560 = vmatprep.subr.mxu0 0.0
    %1561 = vmatpush1.msra.mxu0 0.0
    %1562 = vmatprep.subr.mxu0 0.0
    %1563 = vmatpush1.msra.mxu0 0.0
    %1564 = vmatprep.subr.mxu0 0.0
    %1565 = vmatpush1.msra.mxu0 0.0
    %1566 = vmatprep.subr.mxu0 0.0
    %1567 = vmatpush1.msra.mxu0 0.0
    %1568 = vmatprep.subr.mxu0 0.0
    %1569 = vmatpush1.msra.mxu0 0.0
    %1570 = vmatprep.mubr.f32.mxu0 0.0
    %1571 = vmatmul.mubr.f32.gmra.mrb[0].mxu0 %v1504
    %v1572 = vpop.f32.mrb[0].mxu0
    %v1573 = vadd.f32 0.0, %v1572
    %v1574 = vpop.f32.mrb[0].mxu0
    %1575 = vdwg.mxu0
    %1576 = vrot.lane.b32.xlu0 %v312, 104
    %v1577 = vpop.permute.xlu0 %1576
    %v1580 = vsel %vm315, %v1499, 0
    %1582 = vmatprep.subr.mxu0 0.0
    %1583 = vmatpush1.msra.mxu0 %v1577
    %1584 = vmatprep.subr.mxu0 0.0
    %1585 = vmatpush1.msra.mxu0 0.0
    %1586 = vmatprep.subr.mxu0 0.0
    %1587 = vmatpush1.msra.mxu0 0.0
    %1588 = vmatprep.subr.mxu0 0.0
    %1589 = vmatpush1.msra.mxu0 0.0
    %1590 = vmatprep.subr.mxu0 0.0
    %1591 = vmatpush1.msra.mxu0 0.0
    %1592 = vmatprep.subr.mxu0 0.0
    %1593 = vmatpush1.msra.mxu0 0.0
    %1594 = vmatprep.subr.mxu0 0.0
    %1595 = vmatpush1.msra.mxu0 0.0
    %1596 = vmatprep.subr.mxu0 0.0
    %1597 = vmatpush1.msra.mxu0 0.0
    %1598 = vmatprep.subr.mxu0 0.0
    %1599 = vmatpush1.msra.mxu0 0.0
    %1600 = vmatprep.subr.mxu0 0.0
    %1601 = vmatpush1.msra.mxu0 0.0
    %1602 = vmatprep.subr.mxu0 0.0
    %1603 = vmatpush1.msra.mxu0 0.0
    %1604 = vmatprep.subr.mxu0 0.0
    %1605 = vmatpush1.msra.mxu0 0.0
    %1606 = vmatprep.subr.mxu0 0.0
    %1607 = vmatpush1.msra.mxu0 0.0
    %1608 = vmatprep.subr.mxu0 0.0
    %1609 = vmatpush1.msra.mxu0 0.0
    %1610 = vmatprep.subr.mxu0 0.0
    %1611 = vmatpush1.msra.mxu0 0.0
    %1612 = vmatprep.subr.mxu0 0.0
    %1613 = vmatpush1.msra.mxu0 0.0
    %1614 = vmatprep.subr.mxu0 0.0
    %1615 = vmatpush1.msra.mxu0 0.0
    %1616 = vmatprep.subr.mxu0 0.0
    %1617 = vmatpush1.msra.mxu0 0.0
    %1618 = vmatprep.subr.mxu0 0.0
    %1619 = vmatpush1.msra.mxu0 0.0
    %1620 = vmatprep.subr.mxu0 0.0
    %1621 = vmatpush1.msra.mxu0 0.0
    %1622 = vmatprep.subr.mxu0 0.0
    %1623 = vmatpush1.msra.mxu0 0.0
    %1624 = vmatprep.subr.mxu0 0.0
    %1625 = vmatpush1.msra.mxu0 0.0
    %1626 = vmatprep.subr.mxu0 0.0
    %1627 = vmatpush1.msra.mxu0 0.0
    %1628 = vmatprep.subr.mxu0 0.0
    %1629 = vmatpush1.msra.mxu0 0.0
    %1630 = vmatprep.subr.mxu0 0.0
    %1631 = vmatpush1.msra.mxu0 0.0
    %1632 = vmatprep.subr.mxu0 0.0
    %1633 = vmatpush1.msra.mxu0 0.0
    %1634 = vmatprep.subr.mxu0 0.0
    %1635 = vmatpush1.msra.mxu0 0.0
    %1636 = vmatprep.subr.mxu0 0.0
    %1637 = vmatpush1.msra.mxu0 0.0
    %1638 = vmatprep.subr.mxu0 0.0
    %1639 = vmatpush1.msra.mxu0 0.0
    %1640 = vmatprep.subr.mxu0 0.0
    %1641 = vmatpush1.msra.mxu0 0.0
    %1642 = vmatprep.subr.mxu0 0.0
    %1643 = vmatpush1.msra.mxu0 0.0
    %1644 = vmatprep.subr.mxu0 0.0
    %1645 = vmatpush1.msra.mxu0 0.0
    %1646 = vmatprep.mubr.f32.mxu0 0.0
    %1647 = vmatmul.mubr.f32.gmra.mrb[0].mxu0 %v1580
    %v1648 = vpop.f32.mrb[0].mxu0
    %v1649 = vadd.f32 0.0, %v1648
    %v1650 = vpop.f32.mrb[0].mxu0
    %1651 = vdwg.mxu0
    %1654 = vrot.lane.b32.xlu0 %v900, 8
    %v1655 = vpop.permute.xlu0 %1654
    %1656 = vrot.lane.b32.xlu0 %v977, 8
    %v1657 = vpop.permute.xlu0 %1656
    %1662 = vrot.lane.b32.xlu0 %v1237, 16
    %v1663 = vpop.permute.xlu0 %1662
    %1664 = vrot.lane.b32.xlu0 %v1313, 16
    %v1665 = vpop.permute.xlu0 %1664
    %1670 = vrot.lane.b32.xlu0 %v1573, 24
    %v1671 = vpop.permute.xlu0 %1670
    %1672 = vrot.lane.b32.xlu0 %v1649, 24
    %v1673 = vpop.permute.xlu0 %1672
    %v1676 = vsel %vm315, %v566, %v1655
    %v1677 = vsel %vm315, %v639, %v1657
    %vm1678 = vcmask 130048
    %v1679 = vsel %vm1678, %v1676, %v1663
    %v1680 = vsel %vm1678, %v1677, %v1665
    %vm1681 = vcmask 195584
    %v1682 = vsel %vm1681, %v1679, %v1671
    %v1683 = vsel %vm1681, %v1680, %v1673
    %v1684 = vlaneseq
    %v1685 = vshrl.u32 %v1684, 7
    %v1686 = vsub.s32 0, %v1685
    %v1687 = vrot.slane %v52, %v1686
    %v1689 = vsel %vm63, %v1682, 0
    %v1692 = vsel %vm63, %v1683, 0
    %1694 = vmatprep.subr.mxu0 0.0
    %1695 = vmatpush1.msra.mxu0 %v45
    %1696 = vmatprep.subr.mxu0 0.0
    %1697 = vmatpush1.msra.mxu0 %v46
    %1698 = vmatprep.subr.mxu0 0.0
    %1699 = vmatpush1.msra.mxu0 %v47
    %1700 = vmatprep.subr.mxu0 0.0
    %1701 = vmatpush1.msra.mxu0 %v48
    %1702 = vmatprep.subr.mxu0 0.0
    %1703 = vmatpush1.msra.mxu0 0.0
    %1704 = vmatprep.subr.mxu0 0.0
    %1705 = vmatpush1.msra.mxu0 0.0
    %1706 = vmatprep.subr.mxu0 0.0
    %1707 = vmatpush1.msra.mxu0 0.0
    %1708 = vmatprep.subr.mxu0 0.0
    %1709 = vmatpush1.msra.mxu0 0.0
    %1710 = vmatprep.subr.mxu0 0.0
    %1711 = vmatpush1.msra.mxu0 0.0
    %1712 = vmatprep.subr.mxu0 0.0
    %1713 = vmatpush1.msra.mxu0 0.0
    %1714 = vmatprep.subr.mxu0 0.0
    %1715 = vmatpush1.msra.mxu0 0.0
    %1716 = vmatprep.subr.mxu0 0.0
    %1717 = vmatpush1.msra.mxu0 0.0
    %1718 = vmatprep.subr.mxu0 0.0
    %1719 = vmatpush1.msra.mxu0 0.0
    %1720 = vmatprep.subr.mxu0 0.0
    %1721 = vmatpush1.msra.mxu0 0.0
    %1722 = vmatprep.subr.mxu0 0.0
    %1723 = vmatpush1.msra.mxu0 0.0
    %1724 = vmatprep.subr.mxu0 0.0
    %1725 = vmatpush1.msra.mxu0 0.0
    %1726 = vmatprep.subr.mxu0 0.0
    %1727 = vmatpush1.msra.mxu0 0.0
    %1728 = vmatprep.subr.mxu0 0.0
    %1729 = vmatpush1.msra.mxu0 0.0
    %1730 = vmatprep.subr.mxu0 0.0
    %1731 = vmatpush1.msra.mxu0 0.0
    %1732 = vmatprep.subr.mxu0 0.0
    %1733 = vmatpush1.msra.mxu0 0.0
    %1734 = vmatprep.subr.mxu0 0.0
    %1735 = vmatpush1.msra.mxu0 0.0
    %1736 = vmatprep.subr.mxu0 0.0
    %1737 = vmatpush1.msra.mxu0 0.0
    %1738 = vmatprep.subr.mxu0 0.0
    %1739 = vmatpush1.msra.mxu0 0.0
    %1740 = vmatprep.subr.mxu0 0.0
    %1741 = vmatpush1.msra.mxu0 0.0
    %1742 = vmatprep.subr.mxu0 0.0
    %1743 = vmatpush1.msra.mxu0 0.0
    %1744 = vmatprep.subr.mxu0 0.0
    %1745 = vmatpush1.msra.mxu0 0.0
    %1746 = vmatprep.subr.mxu0 0.0
    %1747 = vmatpush1.msra.mxu0 0.0
    %1748 = vmatprep.subr.mxu0 0.0
    %1749 = vmatpush1.msra.mxu0 0.0
    %1750 = vmatprep.subr.mxu0 0.0
    %1751 = vmatpush1.msra.mxu0 0.0
    %1752 = vmatprep.subr.mxu0 0.0
    %1753 = vmatpush1.msra.mxu0 0.0
    %1754 = vmatprep.subr.mxu0 0.0
    %1755 = vmatpush1.msra.mxu0 0.0
    %1756 = vmatprep.subr.mxu0 0.0
    %1757 = vmatpush1.msra.mxu0 0.0
    %1758 = vmatprep.mubr.f32.mxu0 0.0
    %1759 = vmatmul.mubr.f32.gmra.mrb[0].mxu0 %v1689
    %v1760 = vpop.f32.mrb[0].mxu0
    %v1761 = vadd.f32 %v1687, %v1760
    %v1762 = vpop.f32.mrb[0].mxu0
    %1763 = vmatprep.mubr.f32.mxu0 0.0
    %1764 = vmatmul.mubr.f32.gmra.mrb[0].mxu0 %v1692
    %v1765 = vpop.f32.mrb[0].mxu0
    %v1766 = vadd.f32 %v1687, %v1765
    %v1767 = vpop.f32.mrb[0].mxu0
    %1768 = vdwg.mxu0
    %v1769 = vadd.f32 %v27, %v1761
    %v1770 = vadd.f32 %v28, %v1766
    %v1771 = vsel %vm63, %v1769, 0.0
    %1772 = vadd.xlane.f32.xlu0 %v1771
    %v1773 = vpop.xlane.xlu0 %1772
    %v1774 = vsel %vm63, %v1770, 0.0
    %1775 = vadd.xlane.f32.xlu0 %v1774
    %v1776 = vpop.xlane.xlu0 %1775
    %v1777 = vrcp.pop 32.0
    %v1778 = vmul.f32 %v1773, %v1777
    %v1779 = vmul.f32 %v1776, %v1777
    %v1780 = vsub.f32 %v1769, %v1778
    %v1781 = vsub.f32 %v1770, %v1779
    %v1782 = vmul.f32 %v1780, %v1780
    %v1783 = vmul.f32 %v1781, %v1781
    %v1784 = vsel %vm63, %v1782, 0.0
    %1785 = vadd.xlane.f32.xlu0 %v1784
    %v1786 = vpop.xlane.xlu0 %1785
    %v1787 = vsel %vm63, %v1783, 0.0
    %1788 = vadd.xlane.f32.xlu0 %v1787
    %v1789 = vpop.xlane.xlu0 %1788
    %v1790 = vmul.f32 %v1786, %v1777
    %v1791 = vmul.f32 %v1789, %v1777
    %v1792 = vadd.f32 %v1790, 1e-05
    %v1793 = vadd.f32 %v1791, 1e-05
    %v1794 = vrsqrt.pop %v1792
    %v1795 = vrsqrt.pop %v1793
    %v1796 = vmul.f32 %v1780, %v1794
    %v1797 = vmul.f32 %v1781, %v1795
    %v1798 = vlaneseq
    %v1799 = vshrl.u32 %v1798, 7
    %v1800 = vsub.s32 0, %v1799
    %v1801 = vrot.slane %v53, %v1800
    %v1802 = vmul.f32 %v1796, %v1801
    %v1803 = vmul.f32 %v1797, %v1801
    %v1804 = vlaneseq
    %v1805 = vshrl.u32 %v1804, 7
    %v1806 = vsub.s32 0, %v1805
    %v1807 = vrot.slane %v54, %v1806
    %v1808 = vadd.f32 %v1802, %v1807
    %v1809 = vadd.f32 %v1803, %v1807
    %v1810 = vld [vmem:[%s4] sm:$0xff]
    %v1811 = vld [vmem:[%s4 + $0x8] sm:$0xff]
    %v1812 = vld [vmem:[%s4 + $0x10] sm:$0xff]
    %v1813 = vld [vmem:[%s4 + $0x18] sm:$0xff]
    %v1814 = vlaneseq
    %v1815 = vshrl.u32 %v1814, 7
    %v1816 = vsub.s32 0, %v1815
    %v1817 = vrot.slane %v55, %v1816
    %v1819 = vsel %vm63, %v1808, 0
    %v1822 = vsel %vm63, %v1809, 0
    %1824 = vmatprep.subr.mxu0 0.0
    %1825 = vmatpush1.msra.mxu0 %v1810
    %1826 = vmatprep.subr.mxu0 0.0
    %1827 = vmatpush1.msra.mxu0 %v1811
    %1828 = vmatprep.subr.mxu0 0.0
    %1829 = vmatpush1.msra.mxu0 %v1812
    %1830 = vmatprep.subr.mxu0 0.0
    %1831 = vmatpush1.msra.mxu0 %v1813
    %1832 = vmatprep.subr.mxu0 0.0
    %1833 = vmatpush1.msra.mxu0 0.0
    %1834 = vmatprep.subr.mxu0 0.0
    %1835 = vmatpush1.msra.mxu0 0.0
    %1836 = vmatprep.subr.mxu0 0.0
    %1837 = vmatpush1.msra.mxu0 0.0
    %1838 = vmatprep.subr.mxu0 0.0
    %1839 = vmatpush1.msra.mxu0 0.0
    %1840 = vmatprep.subr.mxu0 0.0
    %1841 = vmatpush1.msra.mxu0 0.0
    %1842 = vmatprep.subr.mxu0 0.0
    %1843 = vmatpush1.msra.mxu0 0.0
    %1844 = vmatprep.subr.mxu0 0.0
    %1845 = vmatpush1.msra.mxu0 0.0
    %1846 = vmatprep.subr.mxu0 0.0
    %1847 = vmatpush1.msra.mxu0 0.0
    %1848 = vmatprep.subr.mxu0 0.0
    %1849 = vmatpush1.msra.mxu0 0.0
    %1850 = vmatprep.subr.mxu0 0.0
    %1851 = vmatpush1.msra.mxu0 0.0
    %1852 = vmatprep.subr.mxu0 0.0
    %1853 = vmatpush1.msra.mxu0 0.0
    %1854 = vmatprep.subr.mxu0 0.0
    %1855 = vmatpush1.msra.mxu0 0.0
    %1856 = vmatprep.subr.mxu0 0.0
    %1857 = vmatpush1.msra.mxu0 0.0
    %1858 = vmatprep.subr.mxu0 0.0
    %1859 = vmatpush1.msra.mxu0 0.0
    %1860 = vmatprep.subr.mxu0 0.0
    %1861 = vmatpush1.msra.mxu0 0.0
    %1862 = vmatprep.subr.mxu0 0.0
    %1863 = vmatpush1.msra.mxu0 0.0
    %1864 = vmatprep.subr.mxu0 0.0
    %1865 = vmatpush1.msra.mxu0 0.0
    %1866 = vmatprep.subr.mxu0 0.0
    %1867 = vmatpush1.msra.mxu0 0.0
    %1868 = vmatprep.subr.mxu0 0.0
    %1869 = vmatpush1.msra.mxu0 0.0
    %1870 = vmatprep.subr.mxu0 0.0
    %1871 = vmatpush1.msra.mxu0 0.0
    %1872 = vmatprep.subr.mxu0 0.0
    %1873 = vmatpush1.msra.mxu0 0.0
    %1874 = vmatprep.subr.mxu0 0.0
    %1875 = vmatpush1.msra.mxu0 0.0
    %1876 = vmatprep.subr.mxu0 0.0
    %1877 = vmatpush1.msra.mxu0 0.0
    %1878 = vmatprep.subr.mxu0 0.0
    %1879 = vmatpush1.msra.mxu0 0.0
    %1880 = vmatprep.subr.mxu0 0.0
    %1881 = vmatpush1.msra.mxu0 0.0
    %1882 = vmatprep.subr.mxu0 0.0
    %1883 = vmatpush1.msra.mxu0 0.0
    %1884 = vmatprep.subr.mxu0 0.0
    %1885 = vmatpush1.msra.mxu0 0.0
    %1886 = vmatprep.subr.mxu0 0.0
    %1887 = vmatpush1.msra.mxu0 0.0
    %1888 = vmatprep.mubr.f32.mxu0 0.0
    %1889 = vmatmul.mubr.f32.gmra.mrb[0].mxu0 %v1819
    %v1890 = vpop.f32.mrb[0].mxu0
    %v1891 = vadd.f32 %v1817, %v1890
    %v1892 = vpop.f32.mrb[0].mxu0
    %1893 = vmatprep.mubr.f32.mxu0 0.0
    %1894 = vmatmul.mubr.f32.gmra.mrb[0].mxu0 %v1822
    %v1895 = vpop.f32.mrb[0].mxu0
    %v1896 = vadd.f32 %v1817, %v1895
    %v1897 = vpop.f32.mrb[0].mxu0
    %1898 = vdwg.mxu0
    %v1899 = vmax.f32 %v1891, 0.0
    %v1900 = vmax.f32 %v1896, 0.0
    %v1901 = vld [vmem:[%s5] sm:$0xff]
    %v1902 = vld [vmem:[%s5 + $0x8] sm:$0xff]
    %v1903 = vld [vmem:[%s5 + $0x10] sm:$0xff]
    %v1904 = vld [vmem:[%s5 + $0x18] sm:$0xff]
    %v1905 = vld [vmem:[%s5 + $0x20] sm:$0xff]
    %v1906 = vld [vmem:[%s5 + $0x28] sm:$0xff]
    %v1907 = vld [vmem:[%s5 + $0x30] sm:$0xff]
    %v1908 = vld [vmem:[%s5 + $0x38] sm:$0xff]
    %v1909 = vlaneseq
    %v1910 = vshrl.u32 %v1909, 7
    %v1911 = vsub.s32 0, %v1910
    %v1912 = vrot.slane %v56, %v1911
    %vm1913 = vcmask 523264
    %v1915 = vsel %vm1913, %v1899, 0
    %v1918 = vsel %vm1913, %v1900, 0
    %1920 = vmatprep.subr.mxu0 0.0
    %1921 = vmatpush1.msra.mxu0 %v1901
    %1922 = vmatprep.subr.mxu0 0.0
    %1923 = vmatpush1.msra.mxu0 %v1902
    %1924 = vmatprep.subr.mxu0 0.0
    %1925 = vmatpush1.msra.mxu0 %v1903
    %1926 = vmatprep.subr.mxu0 0.0
    %1927 = vmatpush1.msra.mxu0 %v1904
    %1928 = vmatprep.subr.mxu0 0.0
    %1929 = vmatpush1.msra.mxu0 %v1905
    %1930 = vmatprep.subr.mxu0 0.0
    %1931 = vmatpush1.msra.mxu0 %v1906
    %1932 = vmatprep.subr.mxu0 0.0
    %1933 = vmatpush1.msra.mxu0 %v1907
    %1934 = vmatprep.subr.mxu0 0.0
    %1935 = vmatpush1.msra.mxu0 %v1908
    %1936 = vmatprep.subr.mxu0 0.0
    %1937 = vmatpush1.msra.mxu0 0.0
    %1938 = vmatprep.subr.mxu0 0.0
    %1939 = vmatpush1.msra.mxu0 0.0
    %1940 = vmatprep.subr.mxu0 0.0
    %1941 = vmatpush1.msra.mxu0 0.0
    %1942 = vmatprep.subr.mxu0 0.0
    %1943 = vmatpush1.msra.mxu0 0.0
    %1944 = vmatprep.subr.mxu0 0.0
    %1945 = vmatpush1.msra.mxu0 0.0
    %1946 = vmatprep.subr.mxu0 0.0
    %1947 = vmatpush1.msra.mxu0 0.0
    %1948 = vmatprep.subr.mxu0 0.0
    %1949 = vmatpush1.msra.mxu0 0.0
    %1950 = vmatprep.subr.mxu0 0.0
    %1951 = vmatpush1.msra.mxu0 0.0
    %1952 = vmatprep.subr.mxu0 0.0
    %1953 = vmatpush1.msra.mxu0 0.0
    %1954 = vmatprep.subr.mxu0 0.0
    %1955 = vmatpush1.msra.mxu0 0.0
    %1956 = vmatprep.subr.mxu0 0.0
    %1957 = vmatpush1.msra.mxu0 0.0
    %1958 = vmatprep.subr.mxu0 0.0
    %1959 = vmatpush1.msra.mxu0 0.0
    %1960 = vmatprep.subr.mxu0 0.0
    %1961 = vmatpush1.msra.mxu0 0.0
    %1962 = vmatprep.subr.mxu0 0.0
    %1963 = vmatpush1.msra.mxu0 0.0
    %1964 = vmatprep.subr.mxu0 0.0
    %1965 = vmatpush1.msra.mxu0 0.0
    %1966 = vmatprep.subr.mxu0 0.0
    %1967 = vmatpush1.msra.mxu0 0.0
    %1968 = vmatprep.subr.mxu0 0.0
    %1969 = vmatpush1.msra.mxu0 0.0
    %1970 = vmatprep.subr.mxu0 0.0
    %1971 = vmatpush1.msra.mxu0 0.0
    %1972 = vmatprep.subr.mxu0 0.0
    %1973 = vmatpush1.msra.mxu0 0.0
    %1974 = vmatprep.subr.mxu0 0.0
    %1975 = vmatpush1.msra.mxu0 0.0
    %1976 = vmatprep.subr.mxu0 0.0
    %1977 = vmatpush1.msra.mxu0 0.0
    %1978 = vmatprep.subr.mxu0 0.0
    %1979 = vmatpush1.msra.mxu0 0.0
    %1980 = vmatprep.subr.mxu0 0.0
    %1981 = vmatpush1.msra.mxu0 0.0
    %1982 = vmatprep.subr.mxu0 0.0
    %1983 = vmatpush1.msra.mxu0 0.0
    %1984 = vmatprep.mubr.f32.mxu0 0.0
    %1985 = vmatmul.mubr.f32.gmra.mrb[0].mxu0 %v1915
    %v1986 = vpop.f32.mrb[0].mxu0
    %v1987 = vadd.f32 %v1912, %v1986
    %v1988 = vpop.f32.mrb[0].mxu0
    %1989 = vmatprep.mubr.f32.mxu0 0.0
    %1990 = vmatmul.mubr.f32.gmra.mrb[0].mxu0 %v1918
    %v1991 = vpop.f32.mrb[0].mxu0
    %v1992 = vadd.f32 %v1912, %v1991
    %v1993 = vpop.f32.mrb[0].mxu0
    %1994 = vdwg.mxu0
    %v1995 = vadd.f32 %v1808, %v1987
    %v1996 = vadd.f32 %v1809, %v1992
    %v1997 = vsel %vm63, %v1995, 0.0
    %1998 = vadd.xlane.f32.xlu0 %v1997
    %v1999 = vpop.xlane.xlu0 %1998
    %v2000 = vsel %vm63, %v1996, 0.0
    %2001 = vadd.xlane.f32.xlu0 %v2000
    %v2002 = vpop.xlane.xlu0 %2001
    %v2003 = vmul.f32 %v1999, %v1777
    %v2004 = vmul.f32 %v2002, %v1777
    %v2005 = vsub.f32 %v1995, %v2003
    %v2006 = vsub.f32 %v1996, %v2004
    %v2007 = vmul.f32 %v2005, %v2005
    %v2008 = vmul.f32 %v2006, %v2006
    %v2009 = vsel %vm63, %v2007, 0.0
    %2010 = vadd.xlane.f32.xlu0 %v2009
    %v2011 = vpop.xlane.xlu0 %2010
    %v2012 = vsel %vm63, %v2008, 0.0
    %2013 = vadd.xlane.f32.xlu0 %v2012
    %v2014 = vpop.xlane.xlu0 %2013
    %v2015 = vmul.f32 %v2011, %v1777
    %v2016 = vmul.f32 %v2014, %v1777
    %v2017 = vadd.f32 %v2015, 1e-05
    %v2018 = vadd.f32 %v2016, 1e-05
    %v2019 = vrsqrt.pop %v2017
    %v2020 = vrsqrt.pop %v2018
    %v2021 = vmul.f32 %v2005, %v2019
    %v2022 = vmul.f32 %v2006, %v2020
    %v2023 = vlaneseq
    %v2024 = vshrl.u32 %v2023, 7
    %v2025 = vsub.s32 0, %v2024
    %v2026 = vrot.slane %v57, %v2025
    %v2027 = vmul.f32 %v2021, %v2026
    %v2028 = vmul.f32 %v2022, %v2026
    %v2029 = vlaneseq
    %v2030 = vshrl.u32 %v2029, 7
    %v2031 = vsub.s32 0, %v2030
    %v2032 = vrot.slane %v58, %v2031
    %v2033 = vadd.f32 %v2027, %v2032
    %v2034 = vadd.f32 %v2028, %v2032
    %2035 = vst.msk [vmem:[#allocation2] sm:$0xff] %vm63, %v2033
    %2036 = vst.msk [vmem:[#allocation2 + $0x8] sm:$0xff] %vm63, %v2034
    // Predicated region
    $region30: #{tpu_custom_call.1} parent=1 // pred_check
      _
    $region31: #{tpu_custom_call.1} parent=1 // pred_check_branch
      %2038 = sbr.rel (0) target = $region33
    $region32: #{tpu_custom_call.1} parent=1 // pred_region
      %s2040 = ssub.s32 256, 256
      %2041 = vsyncadd [#allocation3], %s2040
      %s2042 = sshll.u32 [#allocation2], 4
      %s2043 = int_to_ptr.vmem [resolvable:$true] %s2042
      %2048 = dma.vmem_to_hbm [thread:$0]  %s2043, 256, %s7, [#allocation3], 128, 128, 8
    $region33: #{tpu_custom_call.1} parent=1 // pred_fallthru
      _
    // Predicated region
    $region34: #{tpu_custom_call.1} parent=1 // pred_check
      _
    $region35: #{tpu_custom_call.1} parent=1 // pred_check_branch
      %2050 = sbr.rel (0) target = $region37
    $region36: #{tpu_custom_call.1} parent=1 // pred_region
      %2051 = dma.done [#allocation3], 256
    $region37: #{tpu_custom_call.1} parent=1 // pred_fallthru
      _
    %2052 = vsyncpa [#allocation3], 1

</llo_original>
